<compile_context>
chip_gen: v5e
topology: v5e:2x2
jax: 0.10.0
libtpu: 0.0.40
codegen_flags: <defaults>
</compile_context>

<pallas_src>
import functools

import jax
import jax.numpy as jnp
import numpy as np
from jax.experimental import pallas as pl
from jax.experimental.pallas import tpu as pltpu


# ----------------------------------------------------------------------------
# Helpers
# ----------------------------------------------------------------------------
def _round_up(x, m):
    return ((x + m - 1) // m) * m


def _pad2d(a, rows, cols):
    return jnp.pad(a, ((0, rows - a.shape[0]), (0, cols - a.shape[1])))


def _vmem_capacity_bytes():
    """Per-core VMEM capacity; conservative fallback (v7x: 64 MiB/TC)."""
    try:
        return int(pltpu.get_tpu_info().vmem_capacity_bytes)
    except Exception:
        return 64 * 1024 * 1024


# ----------------------------------------------------------------------------
# Fused small-graph kernel: A resident in VMEM, all layers in one pallas_call
# ----------------------------------------------------------------------------
def _fused_gcn_kernel(*refs, n_layers):
    """refs = (a, x, w0, b0, w1, b1, ..., out).

    a, x, w_l are bf16; b_l is f32 [1, H_l]; out is f32. All operands stay
    VMEM-resident; A is read from HBM exactly once for the whole forward pass.
    """
    a_ref, x_ref = refs[0], refs[1]
    o_ref = refs[-1]
    a = a_ref[...]                       # bf16 [N_pad, N_pad]
    h = x_ref[...]                       # bf16 [N_pad, D0_pad]
    for l in range(n_layers):
        w = refs[2 + 2 * l][...]         # bf16 [Din_pad, Dout_pad]
        b = refs[3 + 2 * l][...]         # f32  [1, Dout_pad]
        # bf16 x bf16 MXU matmuls with f32 accumulation (native MXU mode).
        xw = jnp.dot(h, w, preferred_element_type=jnp.float32).astype(jnp.bfloat16)
        out = jnp.dot(a, xw, preferred_element_type=jnp.float32) + b
        if l < n_layers - 1:
            h = jnp.maximum(out, 0.0).astype(jnp.bfloat16)
        else:
            o_ref[...] = out


def _forward_fused(adj_norm, x, weights, biases, n_pad):
    n, d = x.shape
    k_out = weights[-1].shape[1]
    n_layers = len(weights)

    adj_bf16 = _pad2d(jnp.asarray(adj_norm, jnp.float32), n_pad, n_pad).astype(jnp.bfloat16)
    d0_pad = _round_up(d, 128)
    x_bf16 = _pad2d(jnp.asarray(x, jnp.float32), n_pad, d0_pad).astype(jnp.bfloat16)

    operands = [adj_bf16, x_bf16]
    in_specs = [
        pl.BlockSpec((n_pad, n_pad), lambda i: (0, 0)),
        pl.BlockSpec((n_pad, d0_pad), lambda i: (0, 0)),
    ]
    flops = 0
    d_in_pad = d0_pad
    for ix in range(n_layers):
        d_out = weights[ix].shape[1]
        d_out_pad = _round_up(d_out, 128)
        w_pad = _pad2d(jnp.asarray(weights[ix], jnp.float32),
                       d_in_pad, d_out_pad).astype(jnp.bfloat16)
        b_pad = jnp.pad(jnp.asarray(biases[ix], jnp.float32),
                        (0, d_out_pad - d_out)).reshape(1, d_out_pad)
        operands += [w_pad, b_pad]
        in_specs += [
            pl.BlockSpec((d_in_pad, d_out_pad), lambda i: (0, 0)),
            pl.BlockSpec((1, d_out_pad), lambda i: (0, 0)),
        ]
        flops += 2 * n_pad * d_in_pad * d_out_pad + 2 * n_pad * n_pad * d_out_pad
        d_in_pad = d_out_pad
    d_last_pad = d_in_pad

    in_bytes = sum(int(o.size) * o.dtype.itemsize for o in operands)
    out_bytes = 4 * n_pad * d_last_pad
    # Footprint: resident operands (A possibly materialized twice) + a few
    # f32 activation temporaries + output block.
    footprint = (in_bytes + int(adj_bf16.size) * 2
                 + 6 * 4 * n_pad * max(d0_pad, d_last_pad) + out_bytes)
    vmem_cap = _vmem_capacity_bytes()
    vmem_limit = int(min(0.85 * vmem_cap, max(32 << 20, 2 * footprint)))

    out = pl.pallas_call(
        functools.partial(_fused_gcn_kernel, n_layers=n_layers),
        out_shape=jax.ShapeDtypeStruct((n_pad, d_last_pad), jnp.float32),
        grid_spec=pltpu.PrefetchScalarGridSpec(
            num_scalar_prefetch=0,
            grid=(1,),
            in_specs=in_specs,
            out_specs=pl.BlockSpec((n_pad, d_last_pad), lambda i: (0, 0)),
        ),
        compiler_params=pltpu.CompilerParams(
            dimension_semantics=("arbitrary",),
            vmem_limit_bytes=vmem_limit,
        ),
        cost_estimate=pl.CostEstimate(
            flops=int(flops), transcendentals=0,
            bytes_accessed=int(in_bytes + out_bytes)),
    )(*operands)
    return out[:n, :k_out]


# ----------------------------------------------------------------------------
# Streaming kernel for large graphs: A tiled over (row, k), XW VMEM-resident,
# accumulation directly into the revisited output block.
# ----------------------------------------------------------------------------
def _stream_layer_kernel(a_ref, xw_ref, b_ref, o_ref, *, apply_relu, tk, xw_resident):
    k = pl.program_id(1)

    @pl.when(k == 0)
    def _():
        o_ref[...] = jnp.broadcast_to(b_ref[...], o_ref.shape)   # init with bias

    if xw_resident:
        start = pl.multiple_of(k * tk, tk)
        xw_k = xw_ref[pl.ds(start, tk), :]      # bf16 slice of the resident XW
    else:
        xw_k = xw_ref[...]                      # bf16 k-tile streamed by BlockSpec

    # bf16 x bf16 MXU matmul with f32 accumulation (no f32 upcast of the A tile).
    o_ref[...] += jnp.dot(a_ref[...], xw_k, preferred_element_type=jnp.float32)

    if apply_relu:
        @pl.when(k == pl.num_programs(1) - 1)
        def _():
            o_ref[...] = jnp.maximum(o_ref[...], 0.0)


def _gcn_layer_stream(adj_bf16, h, w, b2d, *, apply_relu, tm, tk, vmem_cap):
    n_pad = adj_bf16.shape[0]
    d_out_pad = w.shape[1]
    grid = (n_pad // tm, n_pad // tk)

    # X @ W hoisted out of the (i, k) loop: one small [N_pad, d_out_pad] matmul
    # per layer in plain XLA, stored bf16 for the MXU.
    xw = jnp.dot(h.astype(jnp.bfloat16), w.astype(jnp.bfloat16),
                 preferred_element_type=jnp.float32).astype(jnp.bfloat16)

    xw_bytes = 2 * n_pad * d_out_pad
    xw_resident = xw_bytes <= min(16 << 20, vmem_cap // 4)
    if xw_resident:
        xw_spec = pl.BlockSpec((n_pad, d_out_pad), lambda i, k: (0, 0))
    else:
        xw_spec = pl.BlockSpec((tk, d_out_pad), lambda i, k: (k, 0))

    footprint = (2 * 2 * tm * tk                                     # A double buffer (bf16)
                 + (xw_bytes if xw_resident else 2 * 2 * tk * d_out_pad)
                 + 2 * 4 * tm * d_out_pad                            # output double buffer (f32)
                 + 4 * d_out_pad)
    vmem_limit = int(min(0.85 * vmem_cap, max(32 << 20, 2 * footprint)))

    kernel = functools.partial(_stream_layer_kernel, apply_relu=apply_relu,
                               tk=tk, xw_resident=xw_resident)
    return pl.pallas_call(
        kernel,
        out_shape=jax.ShapeDtypeStruct((n_pad, d_out_pad), jnp.float32),
        grid_spec=pltpu.PrefetchScalarGridSpec(
            num_scalar_prefetch=0,
            grid=grid,
            in_specs=[
                pl.BlockSpec((tm, tk), lambda i, k: (i, k)),         # A tile (bf16)
                xw_spec,                                             # XW (bf16)
                pl.BlockSpec((1, d_out_pad), lambda i, k: (0, 0)),   # bias (resident)
            ],
            out_specs=pl.BlockSpec((tm, d_out_pad), lambda i, k: (i, 0)),
        ),
        compiler_params=pltpu.CompilerParams(
            dimension_semantics=("parallel", "arbitrary"),
            vmem_limit_bytes=vmem_limit,
        ),
        cost_estimate=pl.CostEstimate(
            flops=2 * n_pad * n_pad * d_out_pad,
            transcendentals=0,
            bytes_accessed=2 * n_pad * n_pad + xw_bytes
                           + 4 * n_pad * d_out_pad + 4 * d_out_pad,
        ),
    )(adj_bf16, xw, b2d)


def _forward_stream(adj_norm, x, weights, biases, *, tm=512, tk=1024):
    n, d = x.shape
    k_out = weights[-1].shape[1]
    vmem_cap = _vmem_capacity_bytes()

    # Pad the node dim so (a) row/contraction tiles are large (>= 512 keeps the
    # A stream near the HBM roofline) and (b) the row-tile count is even, so the
    # "parallel" axis splits evenly across v7x's two TensorCores.
    n_pad = _round_up(n, max(2 * tm, tk))

    adj_bf16 = _pad2d(jnp.asarray(adj_norm, jnp.float32), n_pad, n_pad).astype(jnp.bfloat16)
    h = _pad2d(jnp.asarray(x, jnp.float32), n_pad, _round_up(d, 128))

    n_layers = len(weights)
    for ix in range(n_layers):
        d_in_pad = h.shape[1]
        d_out = weights[ix].shape[1]
        d_out_pad = _round_up(d_out, 128)
        w_pad = _pad2d(jnp.asarray(weights[ix], jnp.float32), d_in_pad, d_out_pad)
        b_pad = jnp.pad(jnp.asarray(biases[ix], jnp.float32),
                        (0, d_out_pad - d_out)).reshape(1, d_out_pad)
        h = _gcn_layer_stream(adj_bf16, h, w_pad, b_pad,
                              apply_relu=(ix != n_layers - 1),
                              tm=tm, tk=tk, vmem_cap=vmem_cap)
    return h[:n, :k_out]


# ----------------------------------------------------------------------------
# Model glue: adjacency preprocessing, parameter init, path dispatch
# ----------------------------------------------------------------------------
def preprocess_adj_dense(adj):
    """Symmetric GCN normalization [Kipf & Welling 2017] on a dense adjacency."""
    n = adj.shape[0]
    adj_tilde = adj + np.eye(n, dtype=adj.dtype)
    degs_inv = np.power(adj_tilde.sum(0), -0.5)
    return adj_tilde * degs_inv[None, :] * degs_inv[:, None]


def init_params(key, dims):
    """Deterministic init matching RobustGCNLayer.__init__ shapes:
       W_l: xavier_normal([D_in, D_out]),  b_l: standard normal([D_out])."""
    weights, biases = [], []
    prev = dims[0]
    for hidden in dims[1:]:
        key, kw, kb = jax.random.split(key, 3)
        std = float(np.sqrt(2.0 / (prev + hidden)))
        weights.append(std * jax.random.normal(kw, (prev, hidden), jnp.float32))
        biases.append(jax.random.normal(kb, (hidden,), jnp.float32))
        prev = hidden
    return weights, biases


def robust_gcn_forward(adj_norm, x, weights, biases, *, force_streaming=False):
    """RobustGCNModel.forward(input, nodes=None) -> logits [N, K].

    Picks the A-resident fused kernel when the bf16 adjacency fits the
    per-generation VMEM budget, otherwise the tiled streaming kernels.
    """
    n = x.shape[0]
    n_pad_small = _round_up(n, 128)
    vmem_cap = _vmem_capacity_bytes()
    fused_ok = (not force_streaming) and \
        (2 * n_pad_small * n_pad_small <= int(0.25 * vmem_cap))
    if fused_ok:
        return _forward_fused(adj_norm, x, weights, biases, n_pad_small)
    return _forward_stream(adj_norm, x, weights, biases)


# TODO(synk): slice_adj / neighborhood-sliced forward (nodes != None) and the
# certification-time routines (bounds_binary, bounds_continuous, dual_backward,
# phi_backward) involve dynamic sparse slicing / top-k over perturbations and
# are not part of the plain forward pass; they are left out of the Pallas kernels.


if __name__ == "__main__":
    key = jax.random.PRNGKey(0)

    # Small synthetic graph: N nodes, binary attributes of dim D, dims=[D, H, K]
    N, D = 300, 32
    dims = [D, 16, 8]

    key, ka, kx = jax.random.split(key, 3)
    a = (jax.random.uniform(ka, (N, N)) < 0.05).astype(np.float32)
    a = np.asarray(a)
    a = np.triu(a, 1)
    a = a + a.T
    adj_norm = jnp.asarray(preprocess_adj_dense(a), dtype=jnp.float32)

    # Binary node attributes [N, D] (float32, as in dual_backward's input.float()).
    x = (jax.random.uniform(kx, (N, D)) < 0.5).astype(jnp.float32)

    weights, biases = init_params(key, dims)

    # Fused (A-resident) path — the default at this size.
    logits = robust_gcn_forward(adj_norm, x, weights, biases)
    logits = jax.block_until_ready(logits)

    # Reference with the same numerics (bf16 A / weights / XW, f32 accumulation).
    def reference(adj_norm, x, weights, biases):
        a_bf16 = adj_norm.astype(jnp.bfloat16)
        h = x
        for ix in range(len(weights)):
            w_bf16 = weights[ix].astype(jnp.bfloat16)
            xw = jnp.dot(h.astype(jnp.bfloat16), w_bf16,
                         preferred_element_type=jnp.float32).astype(jnp.bfloat16)
            h = jnp.dot(a_bf16, xw, preferred_element_type=jnp.float32) + biases[ix]
            if ix != len(weights) - 1:
                h = jnp.maximum(h, 0.0)
        return h

    ref = reference(adj_norm, x, weights, biases)
    assert logits.shape == (N, dims[-1])
    assert jnp.allclose(logits, ref, atol=2e-3, rtol=2e-3), \
        float(jnp.max(jnp.abs(logits - ref)))

    # Also exercise the tiled streaming path (used for large graphs).
    logits_s = robust_gcn_forward(adj_norm, x, weights, biases, force_streaming=True)
    logits_s = jax.block_until_ready(logits_s)
    assert jnp.allclose(logits_s, ref, atol=2e-3, rtol=2e-3), \
        float(jnp.max(jnp.abs(logits_s - ref)))

    print("KERNEL_OK")
</pallas_src>

<mosaic_0001>
module attributes {stable_mosaic.version = 11 : i64} {
  func.func @_fused_gcn_kernel(%arg0: i32, %arg1: memref<384x384xbf16, #tpu.memory_space<vmem>>, %arg2: memref<384x128xbf16, #tpu.memory_space<vmem>>, %arg3: memref<128x128xbf16, #tpu.memory_space<vmem>>, %arg4: memref<1x128xf32, #tpu.memory_space<vmem>>, %arg5: memref<128x128xbf16, #tpu.memory_space<vmem>>, %arg6: memref<1x128xf32, #tpu.memory_space<vmem>>, %arg7: memref<384x128xf32, #tpu.memory_space<vmem>>) attributes {dimension_semantics = [#tpu.dimension_semantics<arbitrary>], iteration_bounds = array<i64: 1>, scalar_prefetch = 0 : i64, scratch_operands = 0 : i64, tpu.core_type = #tpu.core_type<tc>, window_params = [{pipeline_mode = #tpu.pipeline_mode<synchronous>, transform_indices = @transform_0, window_bounds = array<i64: 384, 384>}, {pipeline_mode = #tpu.pipeline_mode<synchronous>, transform_indices = @transform_1, window_bounds = array<i64: 384, 128>}, {pipeline_mode = #tpu.pipeline_mode<synchronous>, transform_indices = @transform_2, window_bounds = array<i64: 128, 128>}, {pipeline_mode = #tpu.pipeline_mode<synchronous>, transform_indices = @transform_3, window_bounds = array<i64: 1, 128>}, {pipeline_mode = #tpu.pipeline_mode<synchronous>, transform_indices = @transform_4, window_bounds = array<i64: 128, 128>}, {pipeline_mode = #tpu.pipeline_mode<synchronous>, transform_indices = @transform_5, window_bounds = array<i64: 1, 128>}, {pipeline_mode = #tpu.pipeline_mode<synchronous>, transform_indices = @transform_6, window_bounds = array<i64: 384, 128>}]} {
    %c0 = arith.constant 0 : index
    %c0_0 = arith.constant 0 : index
    %0 = vector.load %arg1[%c0, %c0_0] : memref<384x384xbf16, #tpu.memory_space<vmem>>, vector<384x384xbf16>
    %c0_1 = arith.constant 0 : index
    %c0_2 = arith.constant 0 : index
    %1 = vector.load %arg2[%c0_1, %c0_2] : memref<384x128xbf16, #tpu.memory_space<vmem>>, vector<384x128xbf16>
    %c0_3 = arith.constant 0 : index
    %c0_4 = arith.constant 0 : index
    %2 = vector.load %arg3[%c0_3, %c0_4] : memref<128x128xbf16, #tpu.memory_space<vmem>>, vector<128x128xbf16>
    %c0_5 = arith.constant 0 : index
    %c0_6 = arith.constant 0 : index
    %3 = vector.load %arg4[%c0_5, %c0_6] : memref<1x128xf32, #tpu.memory_space<vmem>>, vector<1x128xf32>
    %cst = arith.constant dense<0.000000e+00> : vector<384x128xf32>
    %4 = tpu.matmul %1, %2, %cst {dimension_numbers = #tpu.dot_dimension_numbers<[1], [0], [0], [1], [0, 0, 1, 1], [], []>} : vector<384x128xbf16>, vector<128x128xbf16>, vector<384x128xf32> -> vector<384x128xf32>
    %5 = arith.truncf %4 : vector<384x128xf32> to vector<384x128xbf16>
    %cst_7 = arith.constant dense<0.000000e+00> : vector<384x128xf32>
    %6 = tpu.matmul %0, %5, %cst_7 {dimension_numbers = #tpu.dot_dimension_numbers<[1], [0], [0], [1], [0, 0, 1, 1], [], []>} : vector<384x384xbf16>, vector<384x128xbf16>, vector<384x128xf32> -> vector<384x128xf32>
    %7 = vector.broadcast %3 : vector<1x128xf32> to vector<384x128xf32>
    %8 = arith.addf %6, %7 : vector<384x128xf32>
    %cst_8 = arith.constant 0.000000e+00 : f32
    %9 = vector.broadcast %cst_8 : f32 to vector<384x128xf32>
    %10 = arith.maximumf %8, %9 : vector<384x128xf32>
    %11 = arith.truncf %10 : vector<384x128xf32> to vector<384x128xbf16>
    %c0_9 = arith.constant 0 : index
    %c0_10 = arith.constant 0 : index
    %12 = vector.load %arg5[%c0_9, %c0_10] : memref<128x128xbf16, #tpu.memory_space<vmem>>, vector<128x128xbf16>
    %c0_11 = arith.constant 0 : index
    %c0_12 = arith.constant 0 : index
    %13 = vector.load %arg6[%c0_11, %c0_12] : memref<1x128xf32, #tpu.memory_space<vmem>>, vector<1x128xf32>
    %cst_13 = arith.constant dense<0.000000e+00> : vector<384x128xf32>
    %14 = tpu.matmul %11, %12, %cst_13 {dimension_numbers = #tpu.dot_dimension_numbers<[1], [0], [0], [1], [0, 0, 1, 1], [], []>} : vector<384x128xbf16>, vector<128x128xbf16>, vector<384x128xf32> -> vector<384x128xf32>
    %15 = arith.truncf %14 : vector<384x128xf32> to vector<384x128xbf16>
    %cst_14 = arith.constant dense<0.000000e+00> : vector<384x128xf32>
    %16 = tpu.matmul %0, %15, %cst_14 {dimension_numbers = #tpu.dot_dimension_numbers<[1], [0], [0], [1], [0, 0, 1, 1], [], []>} : vector<384x384xbf16>, vector<384x128xbf16>, vector<384x128xf32> -> vector<384x128xf32>
    %17 = vector.broadcast %13 : vector<1x128xf32> to vector<384x128xf32>
    %18 = arith.addf %16, %17 : vector<384x128xf32>
    %c0_15 = arith.constant 0 : index
    %c0_16 = arith.constant 0 : index
    %19 = vector.load %arg7[%c0_15, %c0_16] : memref<384x128xf32, #tpu.memory_space<vmem>>, vector<384x128xf32>
    tpu.vector_store %arg7[%c0_15, %c0_16], %18 {strides = array<i32>} : memref<384x128xf32, #tpu.memory_space<vmem>>, vector<384x128xf32>,
    return
  }
  func.func @transform_0(%arg0: i32) -> (i32, i32) {
    %c0_i32 = arith.constant 0 : i32
    %c0_i32_0 = arith.constant 0 : i32
    %c0_i32_1 = arith.constant 0 : i32
    return %c0_i32, %c0_i32_0 : i32, i32
  }
  func.func @transform_1(%arg0: i32) -> (i32, i32) {
    %c0_i32 = arith.constant 0 : i32
    %c0_i32_0 = arith.constant 0 : i32
    %c0_i32_1 = arith.constant 0 : i32
    return %c0_i32, %c0_i32_0 : i32, i32
  }
  func.func @transform_2(%arg0: i32) -> (i32, i32) {
    %c0_i32 = arith.constant 0 : i32
    %c0_i32_0 = arith.constant 0 : i32
    %c0_i32_1 = arith.constant 0 : i32
    return %c0_i32, %c0_i32_0 : i32, i32
  }
  func.func @transform_3(%arg0: i32) -> (i32, i32) {
    %c0_i32 = arith.constant 0 : i32
    %c0_i32_0 = arith.constant 0 : i32
    %c0_i32_1 = arith.constant 0 : i32
    return %c0_i32, %c0_i32_0 : i32, i32
  }
  func.func @transform_4(%arg0: i32) -> (i32, i32) {
    %c0_i32 = arith.constant 0 : i32
    %c0_i32_0 = arith.constant 0 : i32
    %c0_i32_1 = arith.constant 0 : i32
    return %c0_i32, %c0_i32_0 : i32, i32
  }
  func.func @transform_5(%arg0: i32) -> (i32, i32) {
    %c0_i32 = arith.constant 0 : i32
    %c0_i32_0 = arith.constant 0 : i32
    %c0_i32_1 = arith.constant 0 : i32
    return %c0_i32, %c0_i32_0 : i32, i32
  }
  func.func @transform_6(%arg0: i32) -> (i32, i32) {
    %c0_i32 = arith.constant 0 : i32
    %c0_i32_0 = arith.constant 0 : i32
    %c0_i32_1 = arith.constant 0 : i32
    return %c0_i32, %c0_i32_0 : i32, i32
  }
}

</mosaic_0001>

<llo_original>
// kernel: tpu_custom_call.1
$region0: #{tpu_custom_call.1}
  #allocation0 [shape = 'u32[]', space=smem, size = 0x4, offset = 0x4, fixed_abs, tag = 'smem constant byte address 0x4 - core index']
  #allocation1 [shape = 'u32[72,128]{1,0:T(1,128)}', space=vmem, size = 0x9000, scoped, tag = 'internal scratch']
  %s0 = inlined_call_operand.hbm [shape: bf16[384,384], index: 0, kind: input, shape index: {}]
  %s1 = inlined_call_operand.hbm [shape: bf16[384,128], index: 1, kind: input, shape index: {}]
  %s2 = inlined_call_operand.hbm [shape: bf16[128,128], index: 2, kind: input, shape index: {}]
  %s3 = inlined_call_operand.vmem [shape: f32[1,128], index: 3, kind: input, shape index: {}]
  %s4 = inlined_call_operand.hbm [shape: bf16[128,128], index: 4, kind: input, shape index: {}]
  %s5 = inlined_call_operand.vmem [shape: f32[1,128], index: 5, kind: input, shape index: {}]
  %s6 = inlined_call_operand.hbm [shape: f32[384,128], index: 6, kind: output, shape index: {}]
  %s7 = sld [smem:[#allocation0]]
  $region50: #{tpu_custom_call.1} parent=0
    _
  %s9 = ssub.s32 1, %s7
  %s10 = scalar_select 0, %s9, %s7
  $region1: #{tpu_custom_call.1} parent=0
    #allocation2 [shape = 'u8[294912]{0}', space=vmem, size = 0x48000, scoped, tag = 'input window, operand 0, single buffered']
    #allocation3 [shape = 's32[1]{0}', space=sflag, size = 0x4, scoped, tag = 'scoped memory for tpu_custom_call.1']
    #allocation4 [shape = 's32[1]{0}', space=sflag, size = 0x4, scoped, tag = 'scoped memory for tpu_custom_call.1']
    #allocation5 [shape = 'u8[98304]{0}', space=vmem, size = 0x18000, scoped, tag = 'input window, operand 1, single buffered']
    #allocation6 [shape = 's32[1]{0}', space=sflag, size = 0x4, scoped, tag = 'scoped memory for tpu_custom_call.1']
    #allocation7 [shape = 'u8[32768]{0}', space=vmem, size = 0x8000, scoped, tag = 'input window, operand 2, single buffered']
    #allocation8 [shape = 'u8[32768]{0}', space=vmem, size = 0x8000, scoped, tag = 'input window, operand 4, single buffered']
    #allocation9 [shape = 's32[1]{0}', space=sflag, size = 0x4, scoped, tag = 'scoped memory for tpu_custom_call.1']
    #allocation10 [shape = 'u8[196608]{0}', space=vmem, size = 0x30000, scoped, tag = 'output window, operand 0, single buffered']
    %11 = vsyncpa [#allocation3], 0
    %12 = vsyncpa [#allocation6], 0
    %13 = vsyncpa [#allocation9], 0
    %14 = vsyncpa [#allocation4], 0
    // Predicated region
    $region2: #{tpu_custom_call.1} parent=1 // pred_check
      _
    $region3: #{tpu_custom_call.1} parent=1 // pred_check_branch
      %16 = sbr.rel (0) target = $region5
    $region4: #{tpu_custom_call.1} parent=1 // pred_region
      %18 = vsyncadd [#allocation3], 0
      %s19 = sshll.u32 %s0, 4
      %s20 = int_to_ptr.hbm [resolvable:$true] %s19
      %s21 = sshll.u32 [#allocation2], 4
      %s22 = int_to_ptr.vmem [resolvable:$true] %s21
      %27 = dma.hbm_to_vmem [thread:$0]  %s20, 9216, %s22, [#allocation3], 192, 192, 12
    $region5: #{tpu_custom_call.1} parent=1 // pred_fallthru
      _
    // Predicated region
    $region6: #{tpu_custom_call.1} parent=1 // pred_check
      _
    $region7: #{tpu_custom_call.1} parent=1 // pred_check_branch
      %29 = sbr.rel (0) target = $region9
    $region8: #{tpu_custom_call.1} parent=1 // pred_region
      %31 = vsyncadd [#allocation6], 0
      %s32 = sshll.u32 %s1, 4
      %s33 = int_to_ptr.hbm [resolvable:$true] %s32
      %s34 = sshll.u32 [#allocation5], 4
      %s35 = int_to_ptr.vmem [resolvable:$true] %s34
      %40 = dma.hbm_to_vmem [thread:$0]  %s33, 3072, %s35, [#allocation6], 64, 64, 4
    $region9: #{tpu_custom_call.1} parent=1 // pred_fallthru
      _
    // Predicated region
    $region10: #{tpu_custom_call.1} parent=1 // pred_check
      _
    $region11: #{tpu_custom_call.1} parent=1 // pred_check_branch
      %42 = sbr.rel (0) target = $region13
    $region12: #{tpu_custom_call.1} parent=1 // pred_region
      %44 = vsyncadd [#allocation6], 0
      %s45 = sshll.u32 %s2, 4
      %s46 = int_to_ptr.hbm [resolvable:$true] %s45
      %s47 = sshll.u32 [#allocation7], 4
      %s48 = int_to_ptr.vmem [resolvable:$true] %s47
      %53 = dma.hbm_to_vmem [thread:$0]  %s46, 1024, %s48, [#allocation6], 64, 64, 4
    $region13: #{tpu_custom_call.1} parent=1 // pred_fallthru
      _
    // Predicated region
    $region14: #{tpu_custom_call.1} parent=1 // pred_check
      _
    $region15: #{tpu_custom_call.1} parent=1 // pred_check_branch
      %55 = sbr.rel (0) target = $region17
    $region16: #{tpu_custom_call.1} parent=1 // pred_region
      _
    $region17: #{tpu_custom_call.1} parent=1 // pred_fallthru
      _
    // Predicated region
    $region18: #{tpu_custom_call.1} parent=1 // pred_check
      _
    $region19: #{tpu_custom_call.1} parent=1 // pred_check_branch
      %57 = sbr.rel (0) target = $region21
    $region20: #{tpu_custom_call.1} parent=1 // pred_region
      %59 = vsyncadd [#allocation9], 0
      %s60 = sshll.u32 %s4, 4
      %s61 = int_to_ptr.hbm [resolvable:$true] %s60
      %s62 = sshll.u32 [#allocation8], 4
      %s63 = int_to_ptr.vmem [resolvable:$true] %s62
      %68 = dma.hbm_to_vmem [thread:$0]  %s61, 1024, %s63, [#allocation9], 64, 64, 4
    $region21: #{tpu_custom_call.1} parent=1 // pred_fallthru
      _
    // Predicated region
    $region22: #{tpu_custom_call.1} parent=1 // pred_check
      _
    $region23: #{tpu_custom_call.1} parent=1 // pred_check_branch
      %70 = sbr.rel (0) target = $region25
    $region24: #{tpu_custom_call.1} parent=1 // pred_region
      _
    $region25: #{tpu_custom_call.1} parent=1 // pred_fallthru
      _
    // Predicated region
    $region26: #{tpu_custom_call.1} parent=1 // pred_check
      _
    $region27: #{tpu_custom_call.1} parent=1 // pred_check_branch
      %72 = sbr.rel (0) target = $region29
    $region28: #{tpu_custom_call.1} parent=1 // pred_region
      %74 = dma.done [#allocation3], 9216
    $region29: #{tpu_custom_call.1} parent=1 // pred_fallthru
      _
    // Predicated region
    $region30: #{tpu_custom_call.1} parent=1 // pred_check
      _
    $region31: #{tpu_custom_call.1} parent=1 // pred_check_branch
      %76 = sbr.rel (0) target = $region33
    $region32: #{tpu_custom_call.1} parent=1 // pred_region
      %78 = dma.done [#allocation6], 3072
    $region33: #{tpu_custom_call.1} parent=1 // pred_fallthru
      _
    // Predicated region
    $region34: #{tpu_custom_call.1} parent=1 // pred_check
      _
    $region35: #{tpu_custom_call.1} parent=1 // pred_check_branch
      %80 = sbr.rel (0) target = $region37
    $region36: #{tpu_custom_call.1} parent=1 // pred_region
      %82 = dma.done [#allocation6], 1024
    $region37: #{tpu_custom_call.1} parent=1 // pred_fallthru
      _
    // Predicated region
    $region38: #{tpu_custom_call.1} parent=1 // pred_check
      _
    $region39: #{tpu_custom_call.1} parent=1 // pred_check_branch
      %84 = sbr.rel (0) target = $region41
    $region40: #{tpu_custom_call.1} parent=1 // pred_region
      %86 = dma.done [#allocation9], 1024
    $region41: #{tpu_custom_call.1} parent=1 // pred_fallthru
      _
    %v87 = vld [vmem:[#allocation2] sm:$0xff]
    %v88 = vld [vmem:[#allocation2 + $0x8] sm:$0xf]
    %v89 = vld [vmem:[#allocation2 + $0xc] sm:$0xff]
    %v90 = vld [vmem:[#allocation2 + $0x14] sm:$0xf]
    %v91 = vld [vmem:[#allocation2 + $0x18] sm:$0xff]
    %v92 = vld [vmem:[#allocation2 + $0x20] sm:$0xf]
    %v93 = vld [vmem:[#allocation2 + $0x24] sm:$0xff]
    %v94 = vld [vmem:[#allocation2 + $0x2c] sm:$0xf]
    %v95 = vld [vmem:[#allocation2 + $0x30] sm:$0xff]
    %v96 = vld [vmem:[#allocation2 + $0x38] sm:$0xf]
    %v97 = vld [vmem:[#allocation2 + $0x3c] sm:$0xff]
    %v98 = vld [vmem:[#allocation2 + $0x44] sm:$0xf]
    %v99 = vld [vmem:[#allocation2 + $0x48] sm:$0xff]
    %v100 = vld [vmem:[#allocation2 + $0x50] sm:$0xf]
    %v101 = vld [vmem:[#allocation2 + $0x54] sm:$0xff]
    %v102 = vld [vmem:[#allocation2 + $0x5c] sm:$0xf]
    %v103 = vld [vmem:[#allocation2 + $0x60] sm:$0xff]
    %v104 = vld [vmem:[#allocation2 + $0x68] sm:$0xf]
    %v105 = vld [vmem:[#allocation2 + $0x6c] sm:$0xff]
    %v106 = vld [vmem:[#allocation2 + $0x74] sm:$0xf]
    %v107 = vld [vmem:[#allocation2 + $0x78] sm:$0xff]
    %v108 = vld [vmem:[#allocation2 + $0x80] sm:$0xf]
    %v109 = vld [vmem:[#allocation2 + $0x84] sm:$0xff]
    %v110 = vld [vmem:[#allocation2 + $0x8c] sm:$0xf]
    %v111 = vld [vmem:[#allocation2 + $0x90] sm:$0xff]
    %v112 = vld [vmem:[#allocation2 + $0x98] sm:$0xf]
    %v113 = vld [vmem:[#allocation2 + $0x9c] sm:$0xff]
    %v114 = vld [vmem:[#allocation2 + $0xa4] sm:$0xf]
    %v115 = vld [vmem:[#allocation2 + $0xa8] sm:$0xff]
    %v116 = vld [vmem:[#allocation2 + $0xb0] sm:$0xf]
    %v117 = vld [vmem:[#allocation2 + $0xb4] sm:$0xff]
    %v118 = vld [vmem:[#allocation2 + $0xbc] sm:$0xf]
    %v119 = vld [vmem:[#allocation2 + $0xc0] sm:$0xff]
    %v120 = vld [vmem:[#allocation2 + $0xc8] sm:$0xf]
    %v121 = vld [vmem:[#allocation2 + $0xcc] sm:$0xff]
    %v122 = vld [vmem:[#allocation2 + $0xd4] sm:$0xf]
    %v123 = vld [vmem:[#allocation2 + $0xd8] sm:$0xff]
    %v124 = vld [vmem:[#allocation2 + $0xe0] sm:$0xf]
    %v125 = vld [vmem:[#allocation2 + $0xe4] sm:$0xff]
    %v126 = vld [vmem:[#allocation2 + $0xec] sm:$0xf]
    %v127 = vld [vmem:[#allocation2 + $0xf0] sm:$0xff]
    %v128 = vld [vmem:[#allocation2 + $0xf8] sm:$0xf]
    %v129 = vld [vmem:[#allocation2 + $0xfc] sm:$0xff]
    %v130 = vld [vmem:[#allocation2 + $0x104] sm:$0xf]
    %v131 = vld [vmem:[#allocation2 + $0x108] sm:$0xff]
    %v132 = vld [vmem:[#allocation2 + $0x110] sm:$0xf]
    %v133 = vld [vmem:[#allocation2 + $0x114] sm:$0xff]
    %v134 = vld [vmem:[#allocation2 + $0x11c] sm:$0xf]
    %v135 = vld [vmem:[#allocation2 + $0x120] sm:$0xff]
    %v136 = vld [vmem:[#allocation2 + $0x128] sm:$0xf]
    %v137 = vld [vmem:[#allocation2 + $0x12c] sm:$0xff]
    %v138 = vld [vmem:[#allocation2 + $0x134] sm:$0xf]
    %v139 = vld [vmem:[#allocation2 + $0x138] sm:$0xff]
    %v140 = vld [vmem:[#allocation2 + $0x140] sm:$0xf]
    %v141 = vld [vmem:[#allocation2 + $0x144] sm:$0xff]
    %v142 = vld [vmem:[#allocation2 + $0x14c] sm:$0xf]
    %v143 = vld [vmem:[#allocation2 + $0x150] sm:$0xff]
    %v144 = vld [vmem:[#allocation2 + $0x158] sm:$0xf]
    %v145 = vld [vmem:[#allocation2 + $0x15c] sm:$0xff]
    %v146 = vld [vmem:[#allocation2 + $0x164] sm:$0xf]
    %v147 = vld [vmem:[#allocation2 + $0x168] sm:$0xff]
    %v148 = vld [vmem:[#allocation2 + $0x170] sm:$0xf]
    %v149 = vld [vmem:[#allocation2 + $0x174] sm:$0xff]
    %v150 = vld [vmem:[#allocation2 + $0x17c] sm:$0xf]
    %v151 = vld [vmem:[#allocation2 + $0x180] sm:$0xff]
    %v152 = vld [vmem:[#allocation2 + $0x188] sm:$0xf]
    %v153 = vld [vmem:[#allocation2 + $0x18c] sm:$0xff]
    %v154 = vld [vmem:[#allocation2 + $0x194] sm:$0xf]
    %v155 = vld [vmem:[#allocation2 + $0x198] sm:$0xff]
    %v156 = vld [vmem:[#allocation2 + $0x1a0] sm:$0xf]
    %v157 = vld [vmem:[#allocation2 + $0x1a4] sm:$0xff]
    %v158 = vld [vmem:[#allocation2 + $0x1ac] sm:$0xf]
    %v159 = vld [vmem:[#allocation2 + $0x1b0] sm:$0xff]
    %v160 = vld [vmem:[#allocation2 + $0x1b8] sm:$0xf]
    %v161 = vld [vmem:[#allocation2 + $0x1bc] sm:$0xff]
    %v162 = vld [vmem:[#allocation2 + $0x1c4] sm:$0xf]
    %v163 = vld [vmem:[#allocation2 + $0x1c8] sm:$0xff]
    %v164 = vld [vmem:[#allocation2 + $0x1d0] sm:$0xf]
    %v165 = vld [vmem:[#allocation2 + $0x1d4] sm:$0xff]
    %v166 = vld [vmem:[#allocation2 + $0x1dc] sm:$0xf]
    %v167 = vld [vmem:[#allocation2 + $0x1e0] sm:$0xff]
    %v168 = vld [vmem:[#allocation2 + $0x1e8] sm:$0xf]
    %v169 = vld [vmem:[#allocation2 + $0x1ec] sm:$0xff]
    %v170 = vld [vmem:[#allocation2 + $0x1f4] sm:$0xf]
    %v171 = vld [vmem:[#allocation2 + $0x1f8] sm:$0xff]
    %v172 = vld [vmem:[#allocation2 + $0x200] sm:$0xf]
    %v173 = vld [vmem:[#allocation2 + $0x204] sm:$0xff]
    %v174 = vld [vmem:[#allocation2 + $0x20c] sm:$0xf]
    %v175 = vld [vmem:[#allocation2 + $0x210] sm:$0xff]
    %v176 = vld [vmem:[#allocation2 + $0x218] sm:$0xf]
    %v177 = vld [vmem:[#allocation2 + $0x21c] sm:$0xff]
    %v178 = vld [vmem:[#allocation2 + $0x224] sm:$0xf]
    %v179 = vld [vmem:[#allocation2 + $0x228] sm:$0xff]
    %v180 = vld [vmem:[#allocation2 + $0x230] sm:$0xf]
    %v181 = vld [vmem:[#allocation2 + $0x234] sm:$0xff]
    %v182 = vld [vmem:[#allocation2 + $0x23c] sm:$0xf]
    %v183 = vld [vmem:[#allocation5] sm:$0xf]
    %v184 = vld [vmem:[#allocation5 + $0x4] sm:$0xf]
    %v185 = vld [vmem:[#allocation5 + $0x8] sm:$0xf]
    %v186 = vld [vmem:[#allocation5 + $0xc] sm:$0xf]
    %v187 = vld [vmem:[#allocation5 + $0x10] sm:$0xf]
    %v188 = vld [vmem:[#allocation5 + $0x14] sm:$0xf]
    %v189 = vld [vmem:[#allocation5 + $0x18] sm:$0xf]
    %v190 = vld [vmem:[#allocation5 + $0x1c] sm:$0xf]
    %v191 = vld [vmem:[#allocation5 + $0x20] sm:$0xf]
    %v192 = vld [vmem:[#allocation5 + $0x24] sm:$0xf]
    %v193 = vld [vmem:[#allocation5 + $0x28] sm:$0xf]
    %v194 = vld [vmem:[#allocation5 + $0x2c] sm:$0xf]
    %v195 = vld [vmem:[#allocation5 + $0x30] sm:$0xf]
    %v196 = vld [vmem:[#allocation5 + $0x34] sm:$0xf]
    %v197 = vld [vmem:[#allocation5 + $0x38] sm:$0xf]
    %v198 = vld [vmem:[#allocation5 + $0x3c] sm:$0xf]
    %v199 = vld [vmem:[#allocation5 + $0x40] sm:$0xf]
    %v200 = vld [vmem:[#allocation5 + $0x44] sm:$0xf]
    %v201 = vld [vmem:[#allocation5 + $0x48] sm:$0xf]
    %v202 = vld [vmem:[#allocation5 + $0x4c] sm:$0xf]
    %v203 = vld [vmem:[#allocation5 + $0x50] sm:$0xf]
    %v204 = vld [vmem:[#allocation5 + $0x54] sm:$0xf]
    %v205 = vld [vmem:[#allocation5 + $0x58] sm:$0xf]
    %v206 = vld [vmem:[#allocation5 + $0x5c] sm:$0xf]
    %v207 = vld [vmem:[#allocation5 + $0x60] sm:$0xf]
    %v208 = vld [vmem:[#allocation5 + $0x64] sm:$0xf]
    %v209 = vld [vmem:[#allocation5 + $0x68] sm:$0xf]
    %v210 = vld [vmem:[#allocation5 + $0x6c] sm:$0xf]
    %v211 = vld [vmem:[#allocation5 + $0x70] sm:$0xf]
    %v212 = vld [vmem:[#allocation5 + $0x74] sm:$0xf]
    %v213 = vld [vmem:[#allocation5 + $0x78] sm:$0xf]
    %v214 = vld [vmem:[#allocation5 + $0x7c] sm:$0xf]
    %v215 = vld [vmem:[#allocation5 + $0x80] sm:$0xf]
    %v216 = vld [vmem:[#allocation5 + $0x84] sm:$0xf]
    %v217 = vld [vmem:[#allocation5 + $0x88] sm:$0xf]
    %v218 = vld [vmem:[#allocation5 + $0x8c] sm:$0xf]
    %v219 = vld [vmem:[#allocation5 + $0x90] sm:$0xf]
    %v220 = vld [vmem:[#allocation5 + $0x94] sm:$0xf]
    %v221 = vld [vmem:[#allocation5 + $0x98] sm:$0xf]
    %v222 = vld [vmem:[#allocation5 + $0x9c] sm:$0xf]
    %v223 = vld [vmem:[#allocation5 + $0xa0] sm:$0xf]
    %v224 = vld [vmem:[#allocation5 + $0xa4] sm:$0xf]
    %v225 = vld [vmem:[#allocation5 + $0xa8] sm:$0xf]
    %v226 = vld [vmem:[#allocation5 + $0xac] sm:$0xf]
    %v227 = vld [vmem:[#allocation5 + $0xb0] sm:$0xf]
    %v228 = vld [vmem:[#allocation5 + $0xb4] sm:$0xf]
    %v229 = vld [vmem:[#allocation5 + $0xb8] sm:$0xf]
    %v230 = vld [vmem:[#allocation5 + $0xbc] sm:$0xf]
    %v231 = vld [vmem:[#allocation7] sm:$0xf]
    %v232 = vld [vmem:[#allocation7 + $0x4] sm:$0xf]
    %v233 = vld [vmem:[#allocation7 + $0x8] sm:$0xf]
    %v234 = vld [vmem:[#allocation7 + $0xc] sm:$0xf]
    %v235 = vld [vmem:[#allocation7 + $0x10] sm:$0xf]
    %v236 = vld [vmem:[#allocation7 + $0x14] sm:$0xf]
    %v237 = vld [vmem:[#allocation7 + $0x18] sm:$0xf]
    %v238 = vld [vmem:[#allocation7 + $0x1c] sm:$0xf]
    %v239 = vld [vmem:[#allocation7 + $0x20] sm:$0xf]
    %v240 = vld [vmem:[#allocation7 + $0x24] sm:$0xf]
    %v241 = vld [vmem:[#allocation7 + $0x28] sm:$0xf]
    %v242 = vld [vmem:[#allocation7 + $0x2c] sm:$0xf]
    %v243 = vld [vmem:[#allocation7 + $0x30] sm:$0xf]
    %v244 = vld [vmem:[#allocation7 + $0x34] sm:$0xf]
    %v245 = vld [vmem:[#allocation7 + $0x38] sm:$0xf]
    %v246 = vld [vmem:[#allocation7 + $0x3c] sm:$0xf]
    %v247 = vld [vmem:[%s3] sm:$0x1]
    %v296 = vunpack.c.l.b16 %v183
    %v297 = vunpack.c.l.b16 %v184
    %v298 = vunpack.c.l.b16 %v185
    %v299 = vunpack.c.l.b16 %v186
    %v300 = vunpack.c.l.b16 %v187
    %v301 = vunpack.c.l.b16 %v188
    %v302 = vunpack.c.l.b16 %v189
    %v303 = vunpack.c.l.b16 %v190
    %v304 = vunpack.c.l.b16 %v191
    %v305 = vunpack.c.l.b16 %v192
    %v306 = vunpack.c.l.b16 %v193
    %v307 = vunpack.c.l.b16 %v194
    %v308 = vunpack.c.l.b16 %v195
    %v309 = vunpack.c.l.b16 %v196
    %v310 = vunpack.c.l.b16 %v197
    %v311 = vunpack.c.l.b16 %v198
    %v312 = vunpack.c.l.b16 %v199
    %v313 = vunpack.c.l.b16 %v200
    %v314 = vunpack.c.l.b16 %v201
    %v315 = vunpack.c.l.b16 %v202
    %v316 = vunpack.c.l.b16 %v203
    %v317 = vunpack.c.l.b16 %v204
    %v318 = vunpack.c.l.b16 %v205
    %v319 = vunpack.c.l.b16 %v206
    %v320 = vunpack.c.l.b16 %v207
    %v321 = vunpack.c.l.b16 %v208
    %v322 = vunpack.c.l.b16 %v209
    %v323 = vunpack.c.l.b16 %v210
    %v324 = vunpack.c.l.b16 %v211
    %v325 = vunpack.c.l.b16 %v212
    %v326 = vunpack.c.l.b16 %v213
    %v327 = vunpack.c.l.b16 %v214
    %v328 = vunpack.c.l.b16 %v215
    %v329 = vunpack.c.l.b16 %v216
    %v330 = vunpack.c.l.b16 %v217
    %v331 = vunpack.c.l.b16 %v218
    %v332 = vunpack.c.l.b16 %v219
    %v333 = vunpack.c.l.b16 %v220
    %v334 = vunpack.c.l.b16 %v221
    %v335 = vunpack.c.l.b16 %v222
    %v336 = vunpack.c.l.b16 %v223
    %v337 = vunpack.c.l.b16 %v224
    %v338 = vunpack.c.l.b16 %v225
    %v339 = vunpack.c.l.b16 %v226
    %v340 = vunpack.c.l.b16 %v227
    %v341 = vunpack.c.l.b16 %v228
    %v342 = vunpack.c.l.b16 %v229
    %v343 = vunpack.c.l.b16 %v230
    %v344 = vpack.c.b16 %v297, %v296
    %v345 = vpack.c.b16 %v299, %v298
    %v346 = vpack.c.b16 %v301, %v300
    %v347 = vpack.c.b16 %v303, %v302
    %v348 = vpack.c.b16 %v305, %v304
    %v349 = vpack.c.b16 %v307, %v306
    %v350 = vpack.c.b16 %v309, %v308
    %v351 = vpack.c.b16 %v311, %v310
    %v352 = vpack.c.b16 %v313, %v312
    %v353 = vpack.c.b16 %v315, %v314
    %v354 = vpack.c.b16 %v317, %v316
    %v355 = vpack.c.b16 %v319, %v318
    %v356 = vpack.c.b16 %v321, %v320
    %v357 = vpack.c.b16 %v323, %v322
    %v358 = vpack.c.b16 %v325, %v324
    %v359 = vpack.c.b16 %v327, %v326
    %v360 = vpack.c.b16 %v329, %v328
    %v361 = vpack.c.b16 %v331, %v330
    %v362 = vpack.c.b16 %v333, %v332
    %v363 = vpack.c.b16 %v335, %v334
    %v364 = vpack.c.b16 %v337, %v336
    %v365 = vpack.c.b16 %v339, %v338
    %v366 = vpack.c.b16 %v341, %v340
    %v367 = vpack.c.b16 %v343, %v342
    %v408 = vunpack.c.l.b16 %v231
    %v409 = vunpack.c.l.b16 %v232
    %v410 = vunpack.c.l.b16 %v233
    %v411 = vunpack.c.l.b16 %v234
    %v412 = vunpack.c.l.b16 %v235
    %v413 = vunpack.c.l.b16 %v236
    %v414 = vunpack.c.l.b16 %v237
    %v415 = vunpack.c.l.b16 %v238
    %v416 = vunpack.c.l.b16 %v239
    %v417 = vunpack.c.l.b16 %v240
    %v418 = vunpack.c.l.b16 %v241
    %v419 = vunpack.c.l.b16 %v242
    %v420 = vunpack.c.l.b16 %v243
    %v421 = vunpack.c.l.b16 %v244
    %v422 = vunpack.c.l.b16 %v245
    %v423 = vunpack.c.l.b16 %v246
    %v424 = vpack.c.b16 %v409, %v408
    %v425 = vpack.c.b16 %v411, %v410
    %v426 = vpack.c.b16 %v413, %v412
    %v427 = vpack.c.b16 %v415, %v414
    %v428 = vpack.c.b16 %v417, %v416
    %v429 = vpack.c.b16 %v419, %v418
    %v430 = vpack.c.b16 %v421, %v420
    %v431 = vpack.c.b16 %v423, %v422
    %440 = vmatpush.bf16.msra.mxu0 %v431
    %441 = vmatpush.bf16.msra.mxu0 %v430
    %442 = vmatpush.bf16.msra.mxu0 %v429
    %443 = vmatpush.bf16.msra.mxu0 %v428
    %444 = vmatpush.bf16.msra.mxu0 %v427
    %445 = vmatpush.bf16.msra.mxu0 %v426
    %446 = vmatpush.bf16.msra.mxu0 %v425
    %447 = vmatpush.bf16.msra.mxu0 %v424
    %448 = vmatmul.bf16.gmra.mxu0 %v344
    %v449 = vpop.f32.mrf.mxu0
    %v450 = vadd.f32 0.0, %v449
    %v451 = vpop.f32.mrf.mxu0
    %v452 = vadd.f32 0.0, %v451
    %453 = vmatmul.bf16.gmra.mxu0 %v345
    %v454 = vpop.f32.mrf.mxu0
    %v455 = vadd.f32 0.0, %v454
    %v456 = vpop.f32.mrf.mxu0
    %v457 = vadd.f32 0.0, %v456
    %458 = vmatmul.bf16.gmra.mxu0 %v346
    %v459 = vpop.f32.mrf.mxu0
    %v460 = vadd.f32 0.0, %v459
    %v461 = vpop.f32.mrf.mxu0
    %v462 = vadd.f32 0.0, %v461
    %463 = vmatmul.bf16.gmra.mxu0 %v347
    %v464 = vpop.f32.mrf.mxu0
    %v465 = vadd.f32 0.0, %v464
    %v466 = vpop.f32.mrf.mxu0
    %v467 = vadd.f32 0.0, %v466
    %468 = vmatmul.bf16.gmra.mxu0 %v348
    %v469 = vpop.f32.mrf.mxu0
    %v470 = vadd.f32 0.0, %v469
    %v471 = vpop.f32.mrf.mxu0
    %v472 = vadd.f32 0.0, %v471
    %473 = vmatmul.bf16.gmra.mxu0 %v349
    %v474 = vpop.f32.mrf.mxu0
    %v475 = vadd.f32 0.0, %v474
    %v476 = vpop.f32.mrf.mxu0
    %v477 = vadd.f32 0.0, %v476
    %478 = vmatmul.bf16.gmra.mxu0 %v350
    %v479 = vpop.f32.mrf.mxu0
    %v480 = vadd.f32 0.0, %v479
    %v481 = vpop.f32.mrf.mxu0
    %v482 = vadd.f32 0.0, %v481
    %483 = vmatmul.bf16.gmra.mxu0 %v351
    %v484 = vpop.f32.mrf.mxu0
    %v485 = vadd.f32 0.0, %v484
    %v486 = vpop.f32.mrf.mxu0
    %v487 = vadd.f32 0.0, %v486
    %488 = vmatmul.bf16.gmra.mxu0 %v352
    %v489 = vpop.f32.mrf.mxu0
    %v490 = vadd.f32 0.0, %v489
    %v491 = vpop.f32.mrf.mxu0
    %v492 = vadd.f32 0.0, %v491
    %493 = vmatmul.bf16.gmra.mxu0 %v353
    %v494 = vpop.f32.mrf.mxu0
    %v495 = vadd.f32 0.0, %v494
    %v496 = vpop.f32.mrf.mxu0
    %v497 = vadd.f32 0.0, %v496
    %498 = vmatmul.bf16.gmra.mxu0 %v354
    %v499 = vpop.f32.mrf.mxu0
    %v500 = vadd.f32 0.0, %v499
    %v501 = vpop.f32.mrf.mxu0
    %v502 = vadd.f32 0.0, %v501
    %503 = vmatmul.bf16.gmra.mxu0 %v355
    %v504 = vpop.f32.mrf.mxu0
    %v505 = vadd.f32 0.0, %v504
    %v506 = vpop.f32.mrf.mxu0
    %v507 = vadd.f32 0.0, %v506
    %508 = vmatmul.bf16.gmra.mxu0 %v356
    %v509 = vpop.f32.mrf.mxu0
    %v510 = vadd.f32 0.0, %v509
    %v511 = vpop.f32.mrf.mxu0
    %v512 = vadd.f32 0.0, %v511
    %513 = vmatmul.bf16.gmra.mxu0 %v357
    %v514 = vpop.f32.mrf.mxu0
    %v515 = vadd.f32 0.0, %v514
    %v516 = vpop.f32.mrf.mxu0
    %v517 = vadd.f32 0.0, %v516
    %518 = vmatmul.bf16.gmra.mxu0 %v358
    %v519 = vpop.f32.mrf.mxu0
    %v520 = vadd.f32 0.0, %v519
    %v521 = vpop.f32.mrf.mxu0
    %v522 = vadd.f32 0.0, %v521
    %523 = vmatmul.bf16.gmra.mxu0 %v359
    %v524 = vpop.f32.mrf.mxu0
    %v525 = vadd.f32 0.0, %v524
    %v526 = vpop.f32.mrf.mxu0
    %v527 = vadd.f32 0.0, %v526
    %528 = vmatmul.bf16.gmra.mxu0 %v360
    %v529 = vpop.f32.mrf.mxu0
    %v530 = vadd.f32 0.0, %v529
    %v531 = vpop.f32.mrf.mxu0
    %v532 = vadd.f32 0.0, %v531
    %533 = vmatmul.bf16.gmra.mxu0 %v361
    %v534 = vpop.f32.mrf.mxu0
    %v535 = vadd.f32 0.0, %v534
    %v536 = vpop.f32.mrf.mxu0
    %v537 = vadd.f32 0.0, %v536
    %538 = vmatmul.bf16.gmra.mxu0 %v362
    %v539 = vpop.f32.mrf.mxu0
    %v540 = vadd.f32 0.0, %v539
    %v541 = vpop.f32.mrf.mxu0
    %v542 = vadd.f32 0.0, %v541
    %543 = vmatmul.bf16.gmra.mxu0 %v363
    %v544 = vpop.f32.mrf.mxu0
    %v545 = vadd.f32 0.0, %v544
    %v546 = vpop.f32.mrf.mxu0
    %v547 = vadd.f32 0.0, %v546
    %548 = vmatmul.bf16.gmra.mxu0 %v364
    %v549 = vpop.f32.mrf.mxu0
    %v550 = vadd.f32 0.0, %v549
    %v551 = vpop.f32.mrf.mxu0
    %v552 = vadd.f32 0.0, %v551
    %553 = vmatmul.bf16.gmra.mxu0 %v365
    %v554 = vpop.f32.mrf.mxu0
    %v555 = vadd.f32 0.0, %v554
    %v556 = vpop.f32.mrf.mxu0
    %v557 = vadd.f32 0.0, %v556
    %558 = vmatmul.bf16.gmra.mxu0 %v366
    %v559 = vpop.f32.mrf.mxu0
    %v560 = vadd.f32 0.0, %v559
    %v561 = vpop.f32.mrf.mxu0
    %v562 = vadd.f32 0.0, %v561
    %563 = vmatmul.bf16.gmra.mxu0 %v367
    %v564 = vpop.f32.mrf.mxu0
    %v565 = vadd.f32 0.0, %v564
    %v566 = vpop.f32.mrf.mxu0
    %v567 = vadd.f32 0.0, %v566
    %568 = vdwg.mxu0
    %v569 = vpack.c.bf16 %v452, %v450
    %v570 = vpack.c.bf16 %v457, %v455
    %v571 = vpack.c.bf16 %v462, %v460
    %v572 = vpack.c.bf16 %v467, %v465
    %v573 = vpack.c.bf16 %v472, %v470
    %v574 = vpack.c.bf16 %v477, %v475
    %v575 = vpack.c.bf16 %v482, %v480
    %v576 = vpack.c.bf16 %v487, %v485
    %v577 = vpack.c.bf16 %v492, %v490
    %v578 = vpack.c.bf16 %v497, %v495
    %v579 = vpack.c.bf16 %v502, %v500
    %v580 = vpack.c.bf16 %v507, %v505
    %v581 = vpack.c.bf16 %v512, %v510
    %v582 = vpack.c.bf16 %v517, %v515
    %v583 = vpack.c.bf16 %v522, %v520
    %v584 = vpack.c.bf16 %v527, %v525
    %v585 = vpack.c.bf16 %v532, %v530
    %v586 = vpack.c.bf16 %v537, %v535
    %v587 = vpack.c.bf16 %v542, %v540
    %v588 = vpack.c.bf16 %v547, %v545
    %v589 = vpack.c.bf16 %v552, %v550
    %v590 = vpack.c.bf16 %v557, %v555
    %v591 = vpack.c.bf16 %v562, %v560
    %v592 = vpack.c.bf16 %v567, %v565
    %v594 = vperm.slane %v247, 0
    %v692 = vunpack.c.l.b16 %v87
    %v693 = vunpack.c.h.b16 %v87
    %v694 = vunpack.c.l.b16 %v88
    %v695 = vunpack.c.l.b16 %v89
    %v696 = vunpack.c.h.b16 %v89
    %v697 = vunpack.c.l.b16 %v90
    %v698 = vunpack.c.l.b16 %v91
    %v699 = vunpack.c.h.b16 %v91
    %v700 = vunpack.c.l.b16 %v92
    %v701 = vunpack.c.l.b16 %v93
    %v702 = vunpack.c.h.b16 %v93
    %v703 = vunpack.c.l.b16 %v94
    %v704 = vunpack.c.l.b16 %v95
    %v705 = vunpack.c.h.b16 %v95
    %v706 = vunpack.c.l.b16 %v96
    %v707 = vunpack.c.l.b16 %v97
    %v708 = vunpack.c.h.b16 %v97
    %v709 = vunpack.c.l.b16 %v98
    %v710 = vunpack.c.l.b16 %v99
    %v711 = vunpack.c.h.b16 %v99
    %v712 = vunpack.c.l.b16 %v100
    %v713 = vunpack.c.l.b16 %v101
    %v714 = vunpack.c.h.b16 %v101
    %v715 = vunpack.c.l.b16 %v102
    %v716 = vunpack.c.l.b16 %v103
    %v717 = vunpack.c.h.b16 %v103
    %v718 = vunpack.c.l.b16 %v104
    %v719 = vunpack.c.l.b16 %v105
    %v720 = vunpack.c.h.b16 %v105
    %v721 = vunpack.c.l.b16 %v106
    %v722 = vunpack.c.l.b16 %v107
    %v723 = vunpack.c.h.b16 %v107
    %v724 = vunpack.c.l.b16 %v108
    %v725 = vunpack.c.l.b16 %v109
    %v726 = vunpack.c.h.b16 %v109
    %v727 = vunpack.c.l.b16 %v110
    %v728 = vunpack.c.l.b16 %v111
    %v729 = vunpack.c.h.b16 %v111
    %v730 = vunpack.c.l.b16 %v112
    %v731 = vunpack.c.l.b16 %v113
    %v732 = vunpack.c.h.b16 %v113
    %v733 = vunpack.c.l.b16 %v114
    %v734 = vunpack.c.l.b16 %v115
    %v735 = vunpack.c.h.b16 %v115
    %v736 = vunpack.c.l.b16 %v116
    %v737 = vunpack.c.l.b16 %v117
    %v738 = vunpack.c.h.b16 %v117
    %v739 = vunpack.c.l.b16 %v118
    %v740 = vunpack.c.l.b16 %v119
    %v741 = vunpack.c.h.b16 %v119
    %v742 = vunpack.c.l.b16 %v120
    %v743 = vunpack.c.l.b16 %v121
    %v744 = vunpack.c.h.b16 %v121
    %v745 = vunpack.c.l.b16 %v122
    %v746 = vunpack.c.l.b16 %v123
    %v747 = vunpack.c.h.b16 %v123
    %v748 = vunpack.c.l.b16 %v124
    %v749 = vunpack.c.l.b16 %v125
    %v750 = vunpack.c.h.b16 %v125
    %v751 = vunpack.c.l.b16 %v126
    %v752 = vunpack.c.l.b16 %v127
    %v753 = vunpack.c.h.b16 %v127
    %v754 = vunpack.c.l.b16 %v128
    %v755 = vunpack.c.l.b16 %v129
    %v756 = vunpack.c.h.b16 %v129
    %v757 = vunpack.c.l.b16 %v130
    %v758 = vunpack.c.l.b16 %v131
    %v759 = vunpack.c.h.b16 %v131
    %v760 = vunpack.c.l.b16 %v132
    %v761 = vunpack.c.l.b16 %v133
    %v762 = vunpack.c.h.b16 %v133
    %v763 = vunpack.c.l.b16 %v134
    %v764 = vunpack.c.l.b16 %v135
    %v765 = vunpack.c.h.b16 %v135
    %v766 = vunpack.c.l.b16 %v136
    %v767 = vunpack.c.l.b16 %v137
    %v768 = vunpack.c.h.b16 %v137
    %v769 = vunpack.c.l.b16 %v138
    %v770 = vunpack.c.l.b16 %v139
    %v771 = vunpack.c.h.b16 %v139
    %v772 = vunpack.c.l.b16 %v140
    %v773 = vunpack.c.l.b16 %v141
    %v774 = vunpack.c.h.b16 %v141
    %v775 = vunpack.c.l.b16 %v142
    %v776 = vunpack.c.l.b16 %v143
    %v777 = vunpack.c.h.b16 %v143
    %v778 = vunpack.c.l.b16 %v144
    %v779 = vunpack.c.l.b16 %v145
    %v780 = vunpack.c.h.b16 %v145
    %v781 = vunpack.c.l.b16 %v146
    %v782 = vunpack.c.l.b16 %v147
    %v783 = vunpack.c.h.b16 %v147
    %v784 = vunpack.c.l.b16 %v148
    %v785 = vunpack.c.l.b16 %v149
    %v786 = vunpack.c.h.b16 %v149
    %v787 = vunpack.c.l.b16 %v150
    %v788 = vunpack.c.l.b16 %v151
    %v789 = vunpack.c.h.b16 %v151
    %v790 = vunpack.c.l.b16 %v152
    %v791 = vunpack.c.l.b16 %v153
    %v792 = vunpack.c.h.b16 %v153
    %v793 = vunpack.c.l.b16 %v154
    %v794 = vunpack.c.l.b16 %v155
    %v795 = vunpack.c.h.b16 %v155
    %v796 = vunpack.c.l.b16 %v156
    %v797 = vunpack.c.l.b16 %v157
    %v798 = vunpack.c.h.b16 %v157
    %v799 = vunpack.c.l.b16 %v158
    %v800 = vunpack.c.l.b16 %v159
    %v801 = vunpack.c.h.b16 %v159
    %v802 = vunpack.c.l.b16 %v160
    %v803 = vunpack.c.l.b16 %v161
    %v804 = vunpack.c.h.b16 %v161
    %v805 = vunpack.c.l.b16 %v162
    %v806 = vunpack.c.l.b16 %v163
    %v807 = vunpack.c.h.b16 %v163
    %v808 = vunpack.c.l.b16 %v164
    %v809 = vunpack.c.l.b16 %v165
    %v810 = vunpack.c.h.b16 %v165
    %v811 = vunpack.c.l.b16 %v166
    %v812 = vunpack.c.l.b16 %v167
    %v813 = vunpack.c.h.b16 %v167
    %v814 = vunpack.c.l.b16 %v168
    %v815 = vunpack.c.l.b16 %v169
    %v816 = vunpack.c.h.b16 %v169
    %v817 = vunpack.c.l.b16 %v170
    %v818 = vunpack.c.l.b16 %v171
    %v819 = vunpack.c.h.b16 %v171
    %v820 = vunpack.c.l.b16 %v172
    %v821 = vunpack.c.l.b16 %v173
    %v822 = vunpack.c.h.b16 %v173
    %v823 = vunpack.c.l.b16 %v174
    %v824 = vunpack.c.l.b16 %v175
    %v825 = vunpack.c.h.b16 %v175
    %v826 = vunpack.c.l.b16 %v176
    %v827 = vunpack.c.l.b16 %v177
    %v828 = vunpack.c.h.b16 %v177
    %v829 = vunpack.c.l.b16 %v178
    %v830 = vunpack.c.l.b16 %v179
    %v831 = vunpack.c.h.b16 %v179
    %v832 = vunpack.c.l.b16 %v180
    %v833 = vunpack.c.l.b16 %v181
    %v834 = vunpack.c.h.b16 %v181
    %v835 = vunpack.c.l.b16 %v182
    %v836 = vpack.c.b16 %v695, %v692
    %v837 = vpack.c.b16 %v696, %v693
    %v838 = vpack.c.b16 %v697, %v694
    %v839 = vpack.c.b16 %v701, %v698
    %v840 = vpack.c.b16 %v702, %v699
    %v841 = vpack.c.b16 %v703, %v700
    %v842 = vpack.c.b16 %v707, %v704
    %v843 = vpack.c.b16 %v708, %v705
    %v844 = vpack.c.b16 %v709, %v706
    %v845 = vpack.c.b16 %v713, %v710
    %v846 = vpack.c.b16 %v714, %v711
    %v847 = vpack.c.b16 %v715, %v712
    %v848 = vpack.c.b16 %v719, %v716
    %v849 = vpack.c.b16 %v720, %v717
    %v850 = vpack.c.b16 %v721, %v718
    %v851 = vpack.c.b16 %v725, %v722
    %v852 = vpack.c.b16 %v726, %v723
    %v853 = vpack.c.b16 %v727, %v724
    %v854 = vpack.c.b16 %v731, %v728
    %v855 = vpack.c.b16 %v732, %v729
    %v856 = vpack.c.b16 %v733, %v730
    %v857 = vpack.c.b16 %v737, %v734
    %v858 = vpack.c.b16 %v738, %v735
    %v859 = vpack.c.b16 %v739, %v736
    %v860 = vpack.c.b16 %v743, %v740
    %v861 = vpack.c.b16 %v744, %v741
    %v862 = vpack.c.b16 %v745, %v742
    %v863 = vpack.c.b16 %v749, %v746
    %v864 = vpack.c.b16 %v750, %v747
    %v865 = vpack.c.b16 %v751, %v748
    %v866 = vpack.c.b16 %v755, %v752
    %v867 = vpack.c.b16 %v756, %v753
    %v868 = vpack.c.b16 %v757, %v754
    %v869 = vpack.c.b16 %v761, %v758
    %v870 = vpack.c.b16 %v762, %v759
    %v871 = vpack.c.b16 %v763, %v760
    %v872 = vpack.c.b16 %v767, %v764
    %v873 = vpack.c.b16 %v768, %v765
    %v874 = vpack.c.b16 %v769, %v766
    %v875 = vpack.c.b16 %v773, %v770
    %v876 = vpack.c.b16 %v774, %v771
    %v877 = vpack.c.b16 %v775, %v772
    %v878 = vpack.c.b16 %v779, %v776
    %v879 = vpack.c.b16 %v780, %v777
    %v880 = vpack.c.b16 %v781, %v778
    %v881 = vpack.c.b16 %v785, %v782
    %v882 = vpack.c.b16 %v786, %v783
    %v883 = vpack.c.b16 %v787, %v784
    %v884 = vpack.c.b16 %v791, %v788
    %v885 = vpack.c.b16 %v792, %v789
    %v886 = vpack.c.b16 %v793, %v790
    %v887 = vpack.c.b16 %v797, %v794
    %v888 = vpack.c.b16 %v798, %v795
    %v889 = vpack.c.b16 %v799, %v796
    %v890 = vpack.c.b16 %v803, %v800
    %v891 = vpack.c.b16 %v804, %v801
    %v892 = vpack.c.b16 %v805, %v802
    %v893 = vpack.c.b16 %v809, %v806
    %v894 = vpack.c.b16 %v810, %v807
    %v895 = vpack.c.b16 %v811, %v808
    %v896 = vpack.c.b16 %v815, %v812
    %v897 = vpack.c.b16 %v816, %v813
    %v898 = vpack.c.b16 %v817, %v814
    %v899 = vpack.c.b16 %v821, %v818
    %v900 = vpack.c.b16 %v822, %v819
    %v901 = vpack.c.b16 %v823, %v820
    %v902 = vpack.c.b16 %v827, %v824
    %v903 = vpack.c.b16 %v828, %v825
    %v904 = vpack.c.b16 %v829, %v826
    %v905 = vpack.c.b16 %v833, %v830
    %v906 = vpack.c.b16 %v834, %v831
    %v907 = vpack.c.b16 %v835, %v832
    %980 = vmatpush.bf16.msra.mxu0 %v576
    %981 = vmatpush.bf16.msra.mxu0 %v575
    %982 = vmatpush.bf16.msra.mxu0 %v574
    %983 = vmatpush.bf16.msra.mxu0 %v573
    %984 = vmatpush.bf16.msra.mxu0 %v572
    %985 = vmatpush.bf16.msra.mxu0 %v571
    %986 = vmatpush.bf16.msra.mxu0 %v570
    %987 = vmatpush.bf16.msra.mxu0 %v569
    %988 = vmatmul.bf16.gmra.mxu0 %v836
    %v989 = vpop.f32.mrf.mxu0
    %v990 = vadd.f32 %v594, %v989
    %v991 = vpop.f32.mrf.mxu0
    %v992 = vadd.f32 %v594, %v991
    %993 = vmatmul.bf16.gmra.mxu0 %v839
    %v994 = vpop.f32.mrf.mxu0
    %v995 = vadd.f32 %v594, %v994
    %v996 = vpop.f32.mrf.mxu0
    %v997 = vadd.f32 %v594, %v996
    %998 = vmatmul.bf16.gmra.mxu0 %v842
    %v999 = vpop.f32.mrf.mxu0
    %v1000 = vadd.f32 %v594, %v999
    %v1001 = vpop.f32.mrf.mxu0
    %v1002 = vadd.f32 %v594, %v1001
    %1003 = vmatmul.bf16.gmra.mxu0 %v845
    %v1004 = vpop.f32.mrf.mxu0
    %v1005 = vadd.f32 %v594, %v1004
    %v1006 = vpop.f32.mrf.mxu0
    %v1007 = vadd.f32 %v594, %v1006
    %1008 = vmatmul.bf16.gmra.mxu0 %v848
    %v1009 = vpop.f32.mrf.mxu0
    %v1010 = vadd.f32 %v594, %v1009
    %v1011 = vpop.f32.mrf.mxu0
    %v1012 = vadd.f32 %v594, %v1011
    %1013 = vmatmul.bf16.gmra.mxu0 %v851
    %v1014 = vpop.f32.mrf.mxu0
    %v1015 = vadd.f32 %v594, %v1014
    %v1016 = vpop.f32.mrf.mxu0
    %v1017 = vadd.f32 %v594, %v1016
    %1018 = vmatmul.bf16.gmra.mxu0 %v854
    %v1019 = vpop.f32.mrf.mxu0
    %v1020 = vadd.f32 %v594, %v1019
    %v1021 = vpop.f32.mrf.mxu0
    %v1022 = vadd.f32 %v594, %v1021
    %1023 = vmatmul.bf16.gmra.mxu0 %v857
    %v1024 = vpop.f32.mrf.mxu0
    %v1025 = vadd.f32 %v594, %v1024
    %v1026 = vpop.f32.mrf.mxu0
    %v1027 = vadd.f32 %v594, %v1026
    %1028 = vmatmul.bf16.gmra.mxu0 %v860
    %v1029 = vpop.f32.mrf.mxu0
    %v1030 = vadd.f32 %v594, %v1029
    %v1031 = vpop.f32.mrf.mxu0
    %v1032 = vadd.f32 %v594, %v1031
    %1033 = vmatmul.bf16.gmra.mxu0 %v863
    %v1034 = vpop.f32.mrf.mxu0
    %v1035 = vadd.f32 %v594, %v1034
    %v1036 = vpop.f32.mrf.mxu0
    %v1037 = vadd.f32 %v594, %v1036
    %1038 = vmatmul.bf16.gmra.mxu0 %v866
    %v1039 = vpop.f32.mrf.mxu0
    %v1040 = vadd.f32 %v594, %v1039
    %v1041 = vpop.f32.mrf.mxu0
    %v1042 = vadd.f32 %v594, %v1041
    %1043 = vmatmul.bf16.gmra.mxu0 %v869
    %v1044 = vpop.f32.mrf.mxu0
    %v1045 = vadd.f32 %v594, %v1044
    %v1046 = vpop.f32.mrf.mxu0
    %v1047 = vadd.f32 %v594, %v1046
    %1048 = vmatmul.bf16.gmra.mxu0 %v872
    %v1049 = vpop.f32.mrf.mxu0
    %v1050 = vadd.f32 %v594, %v1049
    %v1051 = vpop.f32.mrf.mxu0
    %v1052 = vadd.f32 %v594, %v1051
    %1053 = vmatmul.bf16.gmra.mxu0 %v875
    %v1054 = vpop.f32.mrf.mxu0
    %v1055 = vadd.f32 %v594, %v1054
    %v1056 = vpop.f32.mrf.mxu0
    %v1057 = vadd.f32 %v594, %v1056
    %1058 = vmatmul.bf16.gmra.mxu0 %v878
    %v1059 = vpop.f32.mrf.mxu0
    %v1060 = vadd.f32 %v594, %v1059
    %v1061 = vpop.f32.mrf.mxu0
    %v1062 = vadd.f32 %v594, %v1061
    %1063 = vmatmul.bf16.gmra.mxu0 %v881
    %v1064 = vpop.f32.mrf.mxu0
    %v1065 = vadd.f32 %v594, %v1064
    %v1066 = vpop.f32.mrf.mxu0
    %v1067 = vadd.f32 %v594, %v1066
    %1068 = vmatmul.bf16.gmra.mxu0 %v884
    %v1069 = vpop.f32.mrf.mxu0
    %v1070 = vadd.f32 %v594, %v1069
    %v1071 = vpop.f32.mrf.mxu0
    %v1072 = vadd.f32 %v594, %v1071
    %1073 = vmatmul.bf16.gmra.mxu0 %v887
    %v1074 = vpop.f32.mrf.mxu0
    %v1075 = vadd.f32 %v594, %v1074
    %v1076 = vpop.f32.mrf.mxu0
    %v1077 = vadd.f32 %v594, %v1076
    %1078 = vmatmul.bf16.gmra.mxu0 %v890
    %v1079 = vpop.f32.mrf.mxu0
    %v1080 = vadd.f32 %v594, %v1079
    %v1081 = vpop.f32.mrf.mxu0
    %v1082 = vadd.f32 %v594, %v1081
    %1083 = vmatmul.bf16.gmra.mxu0 %v893
    %v1084 = vpop.f32.mrf.mxu0
    %v1085 = vadd.f32 %v594, %v1084
    %v1086 = vpop.f32.mrf.mxu0
    %v1087 = vadd.f32 %v594, %v1086
    %1088 = vmatmul.bf16.gmra.mxu0 %v896
    %v1089 = vpop.f32.mrf.mxu0
    %v1090 = vadd.f32 %v594, %v1089
    %v1091 = vpop.f32.mrf.mxu0
    %v1092 = vadd.f32 %v594, %v1091
    %1093 = vmatmul.bf16.gmra.mxu0 %v899
    %v1094 = vpop.f32.mrf.mxu0
    %v1095 = vadd.f32 %v594, %v1094
    %v1096 = vpop.f32.mrf.mxu0
    %v1097 = vadd.f32 %v594, %v1096
    %1098 = vmatmul.bf16.gmra.mxu0 %v902
    %v1099 = vpop.f32.mrf.mxu0
    %v1100 = vadd.f32 %v594, %v1099
    %v1101 = vpop.f32.mrf.mxu0
    %v1102 = vadd.f32 %v594, %v1101
    %1103 = vmatmul.bf16.gmra.mxu0 %v905
    %v1104 = vpop.f32.mrf.mxu0
    %v1105 = vadd.f32 %v594, %v1104
    %v1106 = vpop.f32.mrf.mxu0
    %v1107 = vadd.f32 %v594, %v1106
    %1108 = vdwg.mxu0
    %1109 = vmatpush.bf16.msra.mxu0 %v584
    %1110 = vmatpush.bf16.msra.mxu0 %v583
    %1111 = vmatpush.bf16.msra.mxu0 %v582
    %1112 = vmatpush.bf16.msra.mxu0 %v581
    %1113 = vmatpush.bf16.msra.mxu0 %v580
    %1114 = vmatpush.bf16.msra.mxu0 %v579
    %1115 = vmatpush.bf16.msra.mxu0 %v578
    %1116 = vmatpush.bf16.msra.mxu0 %v577
    %1117 = vmatmul.bf16.gmra.mxu0 %v837
    %v1118 = vpop.f32.mrf.mxu0
    %v1119 = vadd.f32 %v990, %v1118
    %v1120 = vpop.f32.mrf.mxu0
    %v1121 = vadd.f32 %v992, %v1120
    %1122 = vmatmul.bf16.gmra.mxu0 %v840
    %v1123 = vpop.f32.mrf.mxu0
    %v1124 = vadd.f32 %v995, %v1123
    %v1125 = vpop.f32.mrf.mxu0
    %v1126 = vadd.f32 %v997, %v1125
    %1127 = vmatmul.bf16.gmra.mxu0 %v843
    %v1128 = vpop.f32.mrf.mxu0
    %v1129 = vadd.f32 %v1000, %v1128
    %v1130 = vpop.f32.mrf.mxu0
    %v1131 = vadd.f32 %v1002, %v1130
    %1132 = vmatmul.bf16.gmra.mxu0 %v846
    %v1133 = vpop.f32.mrf.mxu0
    %v1134 = vadd.f32 %v1005, %v1133
    %v1135 = vpop.f32.mrf.mxu0
    %v1136 = vadd.f32 %v1007, %v1135
    %1137 = vmatmul.bf16.gmra.mxu0 %v849
    %v1138 = vpop.f32.mrf.mxu0
    %v1139 = vadd.f32 %v1010, %v1138
    %v1140 = vpop.f32.mrf.mxu0
    %v1141 = vadd.f32 %v1012, %v1140
    %1142 = vmatmul.bf16.gmra.mxu0 %v852
    %v1143 = vpop.f32.mrf.mxu0
    %v1144 = vadd.f32 %v1015, %v1143
    %v1145 = vpop.f32.mrf.mxu0
    %v1146 = vadd.f32 %v1017, %v1145
    %1147 = vmatmul.bf16.gmra.mxu0 %v855
    %v1148 = vpop.f32.mrf.mxu0
    %v1149 = vadd.f32 %v1020, %v1148
    %v1150 = vpop.f32.mrf.mxu0
    %v1151 = vadd.f32 %v1022, %v1150
    %1152 = vmatmul.bf16.gmra.mxu0 %v858
    %v1153 = vpop.f32.mrf.mxu0
    %v1154 = vadd.f32 %v1025, %v1153
    %v1155 = vpop.f32.mrf.mxu0
    %v1156 = vadd.f32 %v1027, %v1155
    %1157 = vmatmul.bf16.gmra.mxu0 %v861
    %v1158 = vpop.f32.mrf.mxu0
    %v1159 = vadd.f32 %v1030, %v1158
    %v1160 = vpop.f32.mrf.mxu0
    %v1161 = vadd.f32 %v1032, %v1160
    %1162 = vmatmul.bf16.gmra.mxu0 %v864
    %v1163 = vpop.f32.mrf.mxu0
    %v1164 = vadd.f32 %v1035, %v1163
    %v1165 = vpop.f32.mrf.mxu0
    %v1166 = vadd.f32 %v1037, %v1165
    %1167 = vmatmul.bf16.gmra.mxu0 %v867
    %v1168 = vpop.f32.mrf.mxu0
    %v1169 = vadd.f32 %v1040, %v1168
    %v1170 = vpop.f32.mrf.mxu0
    %v1171 = vadd.f32 %v1042, %v1170
    %1172 = vmatmul.bf16.gmra.mxu0 %v870
    %v1173 = vpop.f32.mrf.mxu0
    %v1174 = vadd.f32 %v1045, %v1173
    %v1175 = vpop.f32.mrf.mxu0
    %v1176 = vadd.f32 %v1047, %v1175
    %1177 = vmatmul.bf16.gmra.mxu0 %v873
    %v1178 = vpop.f32.mrf.mxu0
    %v1179 = vadd.f32 %v1050, %v1178
    %v1180 = vpop.f32.mrf.mxu0
    %v1181 = vadd.f32 %v1052, %v1180
    %1182 = vmatmul.bf16.gmra.mxu0 %v876
    %v1183 = vpop.f32.mrf.mxu0
    %v1184 = vadd.f32 %v1055, %v1183
    %v1185 = vpop.f32.mrf.mxu0
    %v1186 = vadd.f32 %v1057, %v1185
    %1187 = vmatmul.bf16.gmra.mxu0 %v879
    %v1188 = vpop.f32.mrf.mxu0
    %v1189 = vadd.f32 %v1060, %v1188
    %v1190 = vpop.f32.mrf.mxu0
    %v1191 = vadd.f32 %v1062, %v1190
    %1192 = vmatmul.bf16.gmra.mxu0 %v882
    %v1193 = vpop.f32.mrf.mxu0
    %v1194 = vadd.f32 %v1065, %v1193
    %v1195 = vpop.f32.mrf.mxu0
    %v1196 = vadd.f32 %v1067, %v1195
    %1197 = vmatmul.bf16.gmra.mxu0 %v885
    %v1198 = vpop.f32.mrf.mxu0
    %v1199 = vadd.f32 %v1070, %v1198
    %v1200 = vpop.f32.mrf.mxu0
    %v1201 = vadd.f32 %v1072, %v1200
    %1202 = vmatmul.bf16.gmra.mxu0 %v888
    %v1203 = vpop.f32.mrf.mxu0
    %v1204 = vadd.f32 %v1075, %v1203
    %v1205 = vpop.f32.mrf.mxu0
    %v1206 = vadd.f32 %v1077, %v1205
    %1207 = vmatmul.bf16.gmra.mxu0 %v891
    %v1208 = vpop.f32.mrf.mxu0
    %v1209 = vadd.f32 %v1080, %v1208
    %v1210 = vpop.f32.mrf.mxu0
    %v1211 = vadd.f32 %v1082, %v1210
    %1212 = vmatmul.bf16.gmra.mxu0 %v894
    %v1213 = vpop.f32.mrf.mxu0
    %v1214 = vadd.f32 %v1085, %v1213
    %v1215 = vpop.f32.mrf.mxu0
    %v1216 = vadd.f32 %v1087, %v1215
    %1217 = vmatmul.bf16.gmra.mxu0 %v897
    %v1218 = vpop.f32.mrf.mxu0
    %v1219 = vadd.f32 %v1090, %v1218
    %v1220 = vpop.f32.mrf.mxu0
    %v1221 = vadd.f32 %v1092, %v1220
    %1222 = vmatmul.bf16.gmra.mxu0 %v900
    %v1223 = vpop.f32.mrf.mxu0
    %v1224 = vadd.f32 %v1095, %v1223
    %v1225 = vpop.f32.mrf.mxu0
    %v1226 = vadd.f32 %v1097, %v1225
    %1227 = vmatmul.bf16.gmra.mxu0 %v903
    %v1228 = vpop.f32.mrf.mxu0
    %v1229 = vadd.f32 %v1100, %v1228
    %v1230 = vpop.f32.mrf.mxu0
    %v1231 = vadd.f32 %v1102, %v1230
    %1232 = vmatmul.bf16.gmra.mxu0 %v906
    %v1233 = vpop.f32.mrf.mxu0
    %v1234 = vadd.f32 %v1105, %v1233
    %v1235 = vpop.f32.mrf.mxu0
    %v1236 = vadd.f32 %v1107, %v1235
    %1237 = vdwg.mxu0
    %1238 = vmatpush.bf16.msra.mxu0 %v592
    %1239 = vmatpush.bf16.msra.mxu0 %v591
    %1240 = vmatpush.bf16.msra.mxu0 %v590
    %1241 = vmatpush.bf16.msra.mxu0 %v589
    %1242 = vmatpush.bf16.msra.mxu0 %v588
    %1243 = vmatpush.bf16.msra.mxu0 %v587
    %1244 = vmatpush.bf16.msra.mxu0 %v586
    %1245 = vmatpush.bf16.msra.mxu0 %v585
    %1246 = vmatmul.bf16.gmra.mxu0 %v838
    %v1247 = vpop.f32.mrf.mxu0
    %v1248 = vadd.f32 %v1119, %v1247
    %v1249 = vpop.f32.mrf.mxu0
    %v1250 = vadd.f32 %v1121, %v1249
    %1251 = vmatmul.bf16.gmra.mxu0 %v841
    %v1252 = vpop.f32.mrf.mxu0
    %v1253 = vadd.f32 %v1124, %v1252
    %v1254 = vpop.f32.mrf.mxu0
    %v1255 = vadd.f32 %v1126, %v1254
    %1256 = vmatmul.bf16.gmra.mxu0 %v844
    %v1257 = vpop.f32.mrf.mxu0
    %v1258 = vadd.f32 %v1129, %v1257
    %v1259 = vpop.f32.mrf.mxu0
    %v1260 = vadd.f32 %v1131, %v1259
    %1261 = vmatmul.bf16.gmra.mxu0 %v847
    %v1262 = vpop.f32.mrf.mxu0
    %v1263 = vadd.f32 %v1134, %v1262
    %v1264 = vpop.f32.mrf.mxu0
    %v1265 = vadd.f32 %v1136, %v1264
    %1266 = vmatmul.bf16.gmra.mxu0 %v850
    %v1267 = vpop.f32.mrf.mxu0
    %v1268 = vadd.f32 %v1139, %v1267
    %v1269 = vpop.f32.mrf.mxu0
    %v1270 = vadd.f32 %v1141, %v1269
    %1271 = vmatmul.bf16.gmra.mxu0 %v853
    %v1272 = vpop.f32.mrf.mxu0
    %v1273 = vadd.f32 %v1144, %v1272
    %v1274 = vpop.f32.mrf.mxu0
    %v1275 = vadd.f32 %v1146, %v1274
    %1276 = vmatmul.bf16.gmra.mxu0 %v856
    %v1277 = vpop.f32.mrf.mxu0
    %v1278 = vadd.f32 %v1149, %v1277
    %v1279 = vpop.f32.mrf.mxu0
    %v1280 = vadd.f32 %v1151, %v1279
    %1281 = vmatmul.bf16.gmra.mxu0 %v859
    %v1282 = vpop.f32.mrf.mxu0
    %v1283 = vadd.f32 %v1154, %v1282
    %v1284 = vpop.f32.mrf.mxu0
    %v1285 = vadd.f32 %v1156, %v1284
    %1286 = vmatmul.bf16.gmra.mxu0 %v862
    %v1287 = vpop.f32.mrf.mxu0
    %v1288 = vadd.f32 %v1159, %v1287
    %v1289 = vpop.f32.mrf.mxu0
    %v1290 = vadd.f32 %v1161, %v1289
    %1291 = vmatmul.bf16.gmra.mxu0 %v865
    %v1292 = vpop.f32.mrf.mxu0
    %v1293 = vadd.f32 %v1164, %v1292
    %v1294 = vpop.f32.mrf.mxu0
    %v1295 = vadd.f32 %v1166, %v1294
    %1296 = vmatmul.bf16.gmra.mxu0 %v868
    %v1297 = vpop.f32.mrf.mxu0
    %v1298 = vadd.f32 %v1169, %v1297
    %v1299 = vpop.f32.mrf.mxu0
    %v1300 = vadd.f32 %v1171, %v1299
    %1301 = vmatmul.bf16.gmra.mxu0 %v871
    %v1302 = vpop.f32.mrf.mxu0
    %v1303 = vadd.f32 %v1174, %v1302
    %v1304 = vpop.f32.mrf.mxu0
    %v1305 = vadd.f32 %v1176, %v1304
    %1306 = vmatmul.bf16.gmra.mxu0 %v874
    %v1307 = vpop.f32.mrf.mxu0
    %v1308 = vadd.f32 %v1179, %v1307
    %v1309 = vpop.f32.mrf.mxu0
    %v1310 = vadd.f32 %v1181, %v1309
    %1311 = vmatmul.bf16.gmra.mxu0 %v877
    %v1312 = vpop.f32.mrf.mxu0
    %v1313 = vadd.f32 %v1184, %v1312
    %v1314 = vpop.f32.mrf.mxu0
    %v1315 = vadd.f32 %v1186, %v1314
    %1316 = vmatmul.bf16.gmra.mxu0 %v880
    %v1317 = vpop.f32.mrf.mxu0
    %v1318 = vadd.f32 %v1189, %v1317
    %v1319 = vpop.f32.mrf.mxu0
    %v1320 = vadd.f32 %v1191, %v1319
    %1321 = vmatmul.bf16.gmra.mxu0 %v883
    %v1322 = vpop.f32.mrf.mxu0
    %v1323 = vadd.f32 %v1194, %v1322
    %v1324 = vpop.f32.mrf.mxu0
    %v1325 = vadd.f32 %v1196, %v1324
    %1326 = vmatmul.bf16.gmra.mxu0 %v886
    %v1327 = vpop.f32.mrf.mxu0
    %v1328 = vadd.f32 %v1199, %v1327
    %v1329 = vpop.f32.mrf.mxu0
    %v1330 = vadd.f32 %v1201, %v1329
    %1331 = vmatmul.bf16.gmra.mxu0 %v889
    %v1332 = vpop.f32.mrf.mxu0
    %v1333 = vadd.f32 %v1204, %v1332
    %v1334 = vpop.f32.mrf.mxu0
    %v1335 = vadd.f32 %v1206, %v1334
    %1336 = vmatmul.bf16.gmra.mxu0 %v892
    %v1337 = vpop.f32.mrf.mxu0
    %v1338 = vadd.f32 %v1209, %v1337
    %v1339 = vpop.f32.mrf.mxu0
    %v1340 = vadd.f32 %v1211, %v1339
    %1341 = vmatmul.bf16.gmra.mxu0 %v895
    %v1342 = vpop.f32.mrf.mxu0
    %v1343 = vadd.f32 %v1214, %v1342
    %v1344 = vpop.f32.mrf.mxu0
    %v1345 = vadd.f32 %v1216, %v1344
    %1346 = vmatmul.bf16.gmra.mxu0 %v898
    %v1347 = vpop.f32.mrf.mxu0
    %v1348 = vadd.f32 %v1219, %v1347
    %v1349 = vpop.f32.mrf.mxu0
    %v1350 = vadd.f32 %v1221, %v1349
    %1351 = vmatmul.bf16.gmra.mxu0 %v901
    %v1352 = vpop.f32.mrf.mxu0
    %v1353 = vadd.f32 %v1224, %v1352
    %v1354 = vpop.f32.mrf.mxu0
    %v1355 = vadd.f32 %v1226, %v1354
    %1356 = vmatmul.bf16.gmra.mxu0 %v904
    %v1357 = vpop.f32.mrf.mxu0
    %v1358 = vadd.f32 %v1229, %v1357
    %v1359 = vpop.f32.mrf.mxu0
    %v1360 = vadd.f32 %v1231, %v1359
    %1361 = vmatmul.bf16.gmra.mxu0 %v907
    %v1362 = vpop.f32.mrf.mxu0
    %v1363 = vadd.f32 %v1234, %v1362
    %v1364 = vpop.f32.mrf.mxu0
    %v1365 = vadd.f32 %v1236, %v1364
    %1366 = vdwg.mxu0
    %v1367 = vmax.f32 %v1248, 0.0
    %v1368 = vmax.f32 %v1250, 0.0
    %v1369 = vmax.f32 %v1253, 0.0
    %v1370 = vmax.f32 %v1255, 0.0
    %v1371 = vmax.f32 %v1258, 0.0
    %v1372 = vmax.f32 %v1260, 0.0
    %v1373 = vmax.f32 %v1263, 0.0
    %v1374 = vmax.f32 %v1265, 0.0
    %v1375 = vmax.f32 %v1268, 0.0
    %v1376 = vmax.f32 %v1270, 0.0
    %v1377 = vmax.f32 %v1273, 0.0
    %v1378 = vmax.f32 %v1275, 0.0
    %v1379 = vmax.f32 %v1278, 0.0
    %v1380 = vmax.f32 %v1280, 0.0
    %v1381 = vmax.f32 %v1283, 0.0
    %v1382 = vmax.f32 %v1285, 0.0
    %v1383 = vmax.f32 %v1288, 0.0
    %v1384 = vmax.f32 %v1290, 0.0
    %v1385 = vmax.f32 %v1293, 0.0
    %v1386 = vmax.f32 %v1295, 0.0
    %v1387 = vmax.f32 %v1298, 0.0
    %v1388 = vmax.f32 %v1300, 0.0
    %v1389 = vmax.f32 %v1303, 0.0
    %v1390 = vmax.f32 %v1305, 0.0
    %v1391 = vmax.f32 %v1308, 0.0
    %v1392 = vmax.f32 %v1310, 0.0
    %v1393 = vmax.f32 %v1313, 0.0
    %v1394 = vmax.f32 %v1315, 0.0
    %v1395 = vmax.f32 %v1318, 0.0
    %v1396 = vmax.f32 %v1320, 0.0
    %v1397 = vmax.f32 %v1323, 0.0
    %v1398 = vmax.f32 %v1325, 0.0
    %v1399 = vmax.f32 %v1328, 0.0
    %v1400 = vmax.f32 %v1330, 0.0
    %v1401 = vmax.f32 %v1333, 0.0
    %v1402 = vmax.f32 %v1335, 0.0
    %v1403 = vmax.f32 %v1338, 0.0
    %v1404 = vmax.f32 %v1340, 0.0
    %v1405 = vmax.f32 %v1343, 0.0
    %v1406 = vmax.f32 %v1345, 0.0
    %v1407 = vmax.f32 %v1348, 0.0
    %v1408 = vmax.f32 %v1350, 0.0
    %v1409 = vmax.f32 %v1353, 0.0
    %v1410 = vmax.f32 %v1355, 0.0
    %v1411 = vmax.f32 %v1358, 0.0
    %v1412 = vmax.f32 %v1360, 0.0
    %v1413 = vmax.f32 %v1363, 0.0
    %v1414 = vmax.f32 %v1365, 0.0
    %v1415 = vpack.c.bf16 %v1368, %v1367
    %v1416 = vpack.c.bf16 %v1370, %v1369
    %v1417 = vpack.c.bf16 %v1372, %v1371
    %v1418 = vpack.c.bf16 %v1374, %v1373
    %v1419 = vpack.c.bf16 %v1376, %v1375
    %v1420 = vpack.c.bf16 %v1378, %v1377
    %v1421 = vpack.c.bf16 %v1380, %v1379
    %v1422 = vpack.c.bf16 %v1382, %v1381
    %v1423 = vpack.c.bf16 %v1384, %v1383
    %v1424 = vpack.c.bf16 %v1386, %v1385
    %v1425 = vpack.c.bf16 %v1388, %v1387
    %v1426 = vpack.c.bf16 %v1390, %v1389
    %v1427 = vpack.c.bf16 %v1392, %v1391
    %v1428 = vpack.c.bf16 %v1394, %v1393
    %v1429 = vpack.c.bf16 %v1396, %v1395
    %v1430 = vpack.c.bf16 %v1398, %v1397
    %v1431 = vpack.c.bf16 %v1400, %v1399
    %v1432 = vpack.c.bf16 %v1402, %v1401
    %v1433 = vpack.c.bf16 %v1404, %v1403
    %v1434 = vpack.c.bf16 %v1406, %v1405
    %v1435 = vpack.c.bf16 %v1408, %v1407
    %v1436 = vpack.c.bf16 %v1410, %v1409
    %v1437 = vpack.c.bf16 %v1412, %v1411
    %v1438 = vpack.c.bf16 %v1414, %v1413
    %v1439 = vld [vmem:[#allocation8] sm:$0xf]
    %v1440 = vld [vmem:[#allocation8 + $0x4] sm:$0xf]
    %v1441 = vld [vmem:[#allocation8 + $0x8] sm:$0xf]
    %v1442 = vld [vmem:[#allocation8 + $0xc] sm:$0xf]
    %v1443 = vld [vmem:[#allocation8 + $0x10] sm:$0xf]
    %v1444 = vld [vmem:[#allocation8 + $0x14] sm:$0xf]
    %v1445 = vld [vmem:[#allocation8 + $0x18] sm:$0xf]
    %v1446 = vld [vmem:[#allocation8 + $0x1c] sm:$0xf]
    %v1447 = vld [vmem:[#allocation8 + $0x20] sm:$0xf]
    %v1448 = vld [vmem:[#allocation8 + $0x24] sm:$0xf]
    %v1449 = vld [vmem:[#allocation8 + $0x28] sm:$0xf]
    %v1450 = vld [vmem:[#allocation8 + $0x2c] sm:$0xf]
    %v1451 = vld [vmem:[#allocation8 + $0x30] sm:$0xf]
    %v1452 = vld [vmem:[#allocation8 + $0x34] sm:$0xf]
    %v1453 = vld [vmem:[#allocation8 + $0x38] sm:$0xf]
    %v1454 = vld [vmem:[#allocation8 + $0x3c] sm:$0xf]
    %v1455 = vld [vmem:[%s5] sm:$0x1]
    %v1472 = vunpack.c.l.b16 %v1439
    %v1473 = vunpack.c.l.b16 %v1440
    %v1474 = vunpack.c.l.b16 %v1441
    %v1475 = vunpack.c.l.b16 %v1442
    %v1476 = vunpack.c.l.b16 %v1443
    %v1477 = vunpack.c.l.b16 %v1444
    %v1478 = vunpack.c.l.b16 %v1445
    %v1479 = vunpack.c.l.b16 %v1446
    %v1480 = vunpack.c.l.b16 %v1447
    %v1481 = vunpack.c.l.b16 %v1448
    %v1482 = vunpack.c.l.b16 %v1449
    %v1483 = vunpack.c.l.b16 %v1450
    %v1484 = vunpack.c.l.b16 %v1451
    %v1485 = vunpack.c.l.b16 %v1452
    %v1486 = vunpack.c.l.b16 %v1453
    %v1487 = vunpack.c.l.b16 %v1454
    %v1488 = vpack.c.b16 %v1473, %v1472
    %v1489 = vpack.c.b16 %v1475, %v1474
    %v1490 = vpack.c.b16 %v1477, %v1476
    %v1491 = vpack.c.b16 %v1479, %v1478
    %v1492 = vpack.c.b16 %v1481, %v1480
    %v1493 = vpack.c.b16 %v1483, %v1482
    %v1494 = vpack.c.b16 %v1485, %v1484
    %v1495 = vpack.c.b16 %v1487, %v1486
    %1504 = vmatpush.bf16.msra.mxu0 %v1495
    %1505 = vmatpush.bf16.msra.mxu0 %v1494
    %1506 = vmatpush.bf16.msra.mxu0 %v1493
    %1507 = vmatpush.bf16.msra.mxu0 %v1492
    %1508 = vmatpush.bf16.msra.mxu0 %v1491
    %1509 = vmatpush.bf16.msra.mxu0 %v1490
    %1510 = vmatpush.bf16.msra.mxu0 %v1489
    %1511 = vmatpush.bf16.msra.mxu0 %v1488
    %1512 = vmatmul.bf16.gmra.mxu0 %v1415
    %v1513 = vpop.f32.mrf.mxu0
    %v1514 = vadd.f32 0.0, %v1513
    %v1515 = vpop.f32.mrf.mxu0
    %v1516 = vadd.f32 0.0, %v1515
    %1517 = vmatmul.bf16.gmra.mxu0 %v1416
    %v1518 = vpop.f32.mrf.mxu0
    %v1519 = vadd.f32 0.0, %v1518
    %v1520 = vpop.f32.mrf.mxu0
    %v1521 = vadd.f32 0.0, %v1520
    %1522 = vmatmul.bf16.gmra.mxu0 %v1417
    %v1523 = vpop.f32.mrf.mxu0
    %v1524 = vadd.f32 0.0, %v1523
    %v1525 = vpop.f32.mrf.mxu0
    %v1526 = vadd.f32 0.0, %v1525
    %1527 = vmatmul.bf16.gmra.mxu0 %v1418
    %v1528 = vpop.f32.mrf.mxu0
    %v1529 = vadd.f32 0.0, %v1528
    %v1530 = vpop.f32.mrf.mxu0
    %v1531 = vadd.f32 0.0, %v1530
    %1532 = vmatmul.bf16.gmra.mxu0 %v1419
    %v1533 = vpop.f32.mrf.mxu0
    %v1534 = vadd.f32 0.0, %v1533
    %v1535 = vpop.f32.mrf.mxu0
    %v1536 = vadd.f32 0.0, %v1535
    %1537 = vmatmul.bf16.gmra.mxu0 %v1420
    %v1538 = vpop.f32.mrf.mxu0
    %v1539 = vadd.f32 0.0, %v1538
    %v1540 = vpop.f32.mrf.mxu0
    %v1541 = vadd.f32 0.0, %v1540
    %1542 = vmatmul.bf16.gmra.mxu0 %v1421
    %v1543 = vpop.f32.mrf.mxu0
    %v1544 = vadd.f32 0.0, %v1543
    %v1545 = vpop.f32.mrf.mxu0
    %v1546 = vadd.f32 0.0, %v1545
    %1547 = vmatmul.bf16.gmra.mxu0 %v1422
    %v1548 = vpop.f32.mrf.mxu0
    %v1549 = vadd.f32 0.0, %v1548
    %v1550 = vpop.f32.mrf.mxu0
    %v1551 = vadd.f32 0.0, %v1550
    %1552 = vmatmul.bf16.gmra.mxu0 %v1423
    %v1553 = vpop.f32.mrf.mxu0
    %v1554 = vadd.f32 0.0, %v1553
    %v1555 = vpop.f32.mrf.mxu0
    %v1556 = vadd.f32 0.0, %v1555
    %1557 = vmatmul.bf16.gmra.mxu0 %v1424
    %v1558 = vpop.f32.mrf.mxu0
    %v1559 = vadd.f32 0.0, %v1558
    %v1560 = vpop.f32.mrf.mxu0
    %v1561 = vadd.f32 0.0, %v1560
    %1562 = vmatmul.bf16.gmra.mxu0 %v1425
    %v1563 = vpop.f32.mrf.mxu0
    %v1564 = vadd.f32 0.0, %v1563
    %v1565 = vpop.f32.mrf.mxu0
    %v1566 = vadd.f32 0.0, %v1565
    %1567 = vmatmul.bf16.gmra.mxu0 %v1426
    %v1568 = vpop.f32.mrf.mxu0
    %v1569 = vadd.f32 0.0, %v1568
    %v1570 = vpop.f32.mrf.mxu0
    %v1571 = vadd.f32 0.0, %v1570
    %1572 = vmatmul.bf16.gmra.mxu0 %v1427
    %v1573 = vpop.f32.mrf.mxu0
    %v1574 = vadd.f32 0.0, %v1573
    %v1575 = vpop.f32.mrf.mxu0
    %v1576 = vadd.f32 0.0, %v1575
    %1577 = vmatmul.bf16.gmra.mxu0 %v1428
    %v1578 = vpop.f32.mrf.mxu0
    %v1579 = vadd.f32 0.0, %v1578
    %v1580 = vpop.f32.mrf.mxu0
    %v1581 = vadd.f32 0.0, %v1580
    %1582 = vmatmul.bf16.gmra.mxu0 %v1429
    %v1583 = vpop.f32.mrf.mxu0
    %v1584 = vadd.f32 0.0, %v1583
    %v1585 = vpop.f32.mrf.mxu0
    %v1586 = vadd.f32 0.0, %v1585
    %1587 = vmatmul.bf16.gmra.mxu0 %v1430
    %v1588 = vpop.f32.mrf.mxu0
    %v1589 = vadd.f32 0.0, %v1588
    %v1590 = vpop.f32.mrf.mxu0
    %v1591 = vadd.f32 0.0, %v1590
    %1592 = vmatmul.bf16.gmra.mxu0 %v1431
    %v1593 = vpop.f32.mrf.mxu0
    %v1594 = vadd.f32 0.0, %v1593
    %v1595 = vpop.f32.mrf.mxu0
    %v1596 = vadd.f32 0.0, %v1595
    %1597 = vmatmul.bf16.gmra.mxu0 %v1432
    %v1598 = vpop.f32.mrf.mxu0
    %v1599 = vadd.f32 0.0, %v1598
    %v1600 = vpop.f32.mrf.mxu0
    %v1601 = vadd.f32 0.0, %v1600
    %1602 = vmatmul.bf16.gmra.mxu0 %v1433
    %v1603 = vpop.f32.mrf.mxu0
    %v1604 = vadd.f32 0.0, %v1603
    %v1605 = vpop.f32.mrf.mxu0
    %v1606 = vadd.f32 0.0, %v1605
    %1607 = vmatmul.bf16.gmra.mxu0 %v1434
    %v1608 = vpop.f32.mrf.mxu0
    %v1609 = vadd.f32 0.0, %v1608
    %v1610 = vpop.f32.mrf.mxu0
    %v1611 = vadd.f32 0.0, %v1610
    %1612 = vmatmul.bf16.gmra.mxu0 %v1435
    %v1613 = vpop.f32.mrf.mxu0
    %v1614 = vadd.f32 0.0, %v1613
    %v1615 = vpop.f32.mrf.mxu0
    %v1616 = vadd.f32 0.0, %v1615
    %1617 = vmatmul.bf16.gmra.mxu0 %v1436
    %v1618 = vpop.f32.mrf.mxu0
    %v1619 = vadd.f32 0.0, %v1618
    %v1620 = vpop.f32.mrf.mxu0
    %v1621 = vadd.f32 0.0, %v1620
    %1622 = vmatmul.bf16.gmra.mxu0 %v1437
    %v1623 = vpop.f32.mrf.mxu0
    %v1624 = vadd.f32 0.0, %v1623
    %v1625 = vpop.f32.mrf.mxu0
    %v1626 = vadd.f32 0.0, %v1625
    %1627 = vmatmul.bf16.gmra.mxu0 %v1438
    %v1628 = vpop.f32.mrf.mxu0
    %v1629 = vadd.f32 0.0, %v1628
    %v1630 = vpop.f32.mrf.mxu0
    %v1631 = vadd.f32 0.0, %v1630
    %1632 = vdwg.mxu0
    %v1633 = vpack.c.bf16 %v1516, %v1514
    %v1634 = vpack.c.bf16 %v1521, %v1519
    %v1635 = vpack.c.bf16 %v1526, %v1524
    %v1636 = vpack.c.bf16 %v1531, %v1529
    %v1637 = vpack.c.bf16 %v1536, %v1534
    %v1638 = vpack.c.bf16 %v1541, %v1539
    %v1639 = vpack.c.bf16 %v1546, %v1544
    %v1640 = vpack.c.bf16 %v1551, %v1549
    %v1641 = vpack.c.bf16 %v1556, %v1554
    %v1642 = vpack.c.bf16 %v1561, %v1559
    %v1643 = vpack.c.bf16 %v1566, %v1564
    %v1644 = vpack.c.bf16 %v1571, %v1569
    %v1645 = vpack.c.bf16 %v1576, %v1574
    %v1646 = vpack.c.bf16 %v1581, %v1579
    %v1647 = vpack.c.bf16 %v1586, %v1584
    %v1648 = vpack.c.bf16 %v1591, %v1589
    %v1649 = vpack.c.bf16 %v1596, %v1594
    %v1650 = vpack.c.bf16 %v1601, %v1599
    %v1651 = vpack.c.bf16 %v1606, %v1604
    %v1652 = vpack.c.bf16 %v1611, %v1609
    %v1653 = vpack.c.bf16 %v1616, %v1614
    %v1654 = vpack.c.bf16 %v1621, %v1619
    %v1655 = vpack.c.bf16 %v1626, %v1624
    %v1656 = vpack.c.bf16 %v1631, %v1629
    %v1658 = vperm.slane %v1455, 0
    %1660 = vmatpush.bf16.msra.mxu0 %v1640
    %1661 = vmatpush.bf16.msra.mxu0 %v1639
    %1662 = vmatpush.bf16.msra.mxu0 %v1638
    %1663 = vmatpush.bf16.msra.mxu0 %v1637
    %1664 = vmatpush.bf16.msra.mxu0 %v1636
    %1665 = vmatpush.bf16.msra.mxu0 %v1635
    %1666 = vmatpush.bf16.msra.mxu0 %v1634
    %1667 = vmatpush.bf16.msra.mxu0 %v1633
    %1668 = vmatmul.bf16.gmra.mxu0 %v836
    %v1669 = vpop.f32.mrf.mxu0
    %v1670 = vadd.f32 %v1658, %v1669
    %v1671 = vpop.f32.mrf.mxu0
    %v1672 = vadd.f32 %v1658, %v1671
    %1673 = vmatmul.bf16.gmra.mxu0 %v839
    %v1674 = vpop.f32.mrf.mxu0
    %v1675 = vadd.f32 %v1658, %v1674
    %v1676 = vpop.f32.mrf.mxu0
    %v1677 = vadd.f32 %v1658, %v1676
    %1678 = vmatmul.bf16.gmra.mxu0 %v842
    %v1679 = vpop.f32.mrf.mxu0
    %v1680 = vadd.f32 %v1658, %v1679
    %v1681 = vpop.f32.mrf.mxu0
    %v1682 = vadd.f32 %v1658, %v1681
    %1683 = vmatmul.bf16.gmra.mxu0 %v845
    %v1684 = vpop.f32.mrf.mxu0
    %v1685 = vadd.f32 %v1658, %v1684
    %v1686 = vpop.f32.mrf.mxu0
    %v1687 = vadd.f32 %v1658, %v1686
    %1688 = vmatmul.bf16.gmra.mxu0 %v848
    %v1689 = vpop.f32.mrf.mxu0
    %v1690 = vadd.f32 %v1658, %v1689
    %v1691 = vpop.f32.mrf.mxu0
    %v1692 = vadd.f32 %v1658, %v1691
    %1693 = vmatmul.bf16.gmra.mxu0 %v851
    %v1694 = vpop.f32.mrf.mxu0
    %v1695 = vadd.f32 %v1658, %v1694
    %v1696 = vpop.f32.mrf.mxu0
    %v1697 = vadd.f32 %v1658, %v1696
    %1698 = vmatmul.bf16.gmra.mxu0 %v854
    %v1699 = vpop.f32.mrf.mxu0
    %v1700 = vadd.f32 %v1658, %v1699
    %v1701 = vpop.f32.mrf.mxu0
    %v1702 = vadd.f32 %v1658, %v1701
    %1703 = vmatmul.bf16.gmra.mxu0 %v857
    %v1704 = vpop.f32.mrf.mxu0
    %v1705 = vadd.f32 %v1658, %v1704
    %v1706 = vpop.f32.mrf.mxu0
    %v1707 = vadd.f32 %v1658, %v1706
    %1708 = vmatmul.bf16.gmra.mxu0 %v860
    %v1709 = vpop.f32.mrf.mxu0
    %v1710 = vadd.f32 %v1658, %v1709
    %v1711 = vpop.f32.mrf.mxu0
    %v1712 = vadd.f32 %v1658, %v1711
    %1713 = vmatmul.bf16.gmra.mxu0 %v863
    %v1714 = vpop.f32.mrf.mxu0
    %v1715 = vadd.f32 %v1658, %v1714
    %v1716 = vpop.f32.mrf.mxu0
    %v1717 = vadd.f32 %v1658, %v1716
    %1718 = vmatmul.bf16.gmra.mxu0 %v866
    %v1719 = vpop.f32.mrf.mxu0
    %v1720 = vadd.f32 %v1658, %v1719
    %v1721 = vpop.f32.mrf.mxu0
    %v1722 = vadd.f32 %v1658, %v1721
    %1723 = vmatmul.bf16.gmra.mxu0 %v869
    %v1724 = vpop.f32.mrf.mxu0
    %v1725 = vadd.f32 %v1658, %v1724
    %v1726 = vpop.f32.mrf.mxu0
    %v1727 = vadd.f32 %v1658, %v1726
    %1728 = vmatmul.bf16.gmra.mxu0 %v872
    %v1729 = vpop.f32.mrf.mxu0
    %v1730 = vadd.f32 %v1658, %v1729
    %v1731 = vpop.f32.mrf.mxu0
    %v1732 = vadd.f32 %v1658, %v1731
    %1733 = vmatmul.bf16.gmra.mxu0 %v875
    %v1734 = vpop.f32.mrf.mxu0
    %v1735 = vadd.f32 %v1658, %v1734
    %v1736 = vpop.f32.mrf.mxu0
    %v1737 = vadd.f32 %v1658, %v1736
    %1738 = vmatmul.bf16.gmra.mxu0 %v878
    %v1739 = vpop.f32.mrf.mxu0
    %v1740 = vadd.f32 %v1658, %v1739
    %v1741 = vpop.f32.mrf.mxu0
    %v1742 = vadd.f32 %v1658, %v1741
    %1743 = vmatmul.bf16.gmra.mxu0 %v881
    %v1744 = vpop.f32.mrf.mxu0
    %v1745 = vadd.f32 %v1658, %v1744
    %v1746 = vpop.f32.mrf.mxu0
    %v1747 = vadd.f32 %v1658, %v1746
    %1748 = vmatmul.bf16.gmra.mxu0 %v884
    %v1749 = vpop.f32.mrf.mxu0
    %v1750 = vadd.f32 %v1658, %v1749
    %v1751 = vpop.f32.mrf.mxu0
    %v1752 = vadd.f32 %v1658, %v1751
    %1753 = vmatmul.bf16.gmra.mxu0 %v887
    %v1754 = vpop.f32.mrf.mxu0
    %v1755 = vadd.f32 %v1658, %v1754
    %v1756 = vpop.f32.mrf.mxu0
    %v1757 = vadd.f32 %v1658, %v1756
    %1758 = vmatmul.bf16.gmra.mxu0 %v890
    %v1759 = vpop.f32.mrf.mxu0
    %v1760 = vadd.f32 %v1658, %v1759
    %v1761 = vpop.f32.mrf.mxu0
    %v1762 = vadd.f32 %v1658, %v1761
    %1763 = vmatmul.bf16.gmra.mxu0 %v893
    %v1764 = vpop.f32.mrf.mxu0
    %v1765 = vadd.f32 %v1658, %v1764
    %v1766 = vpop.f32.mrf.mxu0
    %v1767 = vadd.f32 %v1658, %v1766
    %1768 = vmatmul.bf16.gmra.mxu0 %v896
    %v1769 = vpop.f32.mrf.mxu0
    %v1770 = vadd.f32 %v1658, %v1769
    %v1771 = vpop.f32.mrf.mxu0
    %v1772 = vadd.f32 %v1658, %v1771
    %1773 = vmatmul.bf16.gmra.mxu0 %v899
    %v1774 = vpop.f32.mrf.mxu0
    %v1775 = vadd.f32 %v1658, %v1774
    %v1776 = vpop.f32.mrf.mxu0
    %v1777 = vadd.f32 %v1658, %v1776
    %1778 = vmatmul.bf16.gmra.mxu0 %v902
    %v1779 = vpop.f32.mrf.mxu0
    %v1780 = vadd.f32 %v1658, %v1779
    %v1781 = vpop.f32.mrf.mxu0
    %v1782 = vadd.f32 %v1658, %v1781
    %1783 = vmatmul.bf16.gmra.mxu0 %v905
    %v1784 = vpop.f32.mrf.mxu0
    %v1785 = vadd.f32 %v1658, %v1784
    %v1786 = vpop.f32.mrf.mxu0
    %v1787 = vadd.f32 %v1658, %v1786
    %1788 = vdwg.mxu0
    %1789 = vmatpush.bf16.msra.mxu0 %v1648
    %1790 = vmatpush.bf16.msra.mxu0 %v1647
    %1791 = vmatpush.bf16.msra.mxu0 %v1646
    %1792 = vmatpush.bf16.msra.mxu0 %v1645
    %1793 = vmatpush.bf16.msra.mxu0 %v1644
    %1794 = vmatpush.bf16.msra.mxu0 %v1643
    %1795 = vmatpush.bf16.msra.mxu0 %v1642
    %1796 = vmatpush.bf16.msra.mxu0 %v1641
    %1797 = vmatmul.bf16.gmra.mxu0 %v837
    %v1798 = vpop.f32.mrf.mxu0
    %v1799 = vadd.f32 %v1670, %v1798
    %v1800 = vpop.f32.mrf.mxu0
    %v1801 = vadd.f32 %v1672, %v1800
    %1802 = vmatmul.bf16.gmra.mxu0 %v840
    %v1803 = vpop.f32.mrf.mxu0
    %v1804 = vadd.f32 %v1675, %v1803
    %v1805 = vpop.f32.mrf.mxu0
    %v1806 = vadd.f32 %v1677, %v1805
    %1807 = vmatmul.bf16.gmra.mxu0 %v843
    %v1808 = vpop.f32.mrf.mxu0
    %v1809 = vadd.f32 %v1680, %v1808
    %v1810 = vpop.f32.mrf.mxu0
    %v1811 = vadd.f32 %v1682, %v1810
    %1812 = vmatmul.bf16.gmra.mxu0 %v846
    %v1813 = vpop.f32.mrf.mxu0
    %v1814 = vadd.f32 %v1685, %v1813
    %v1815 = vpop.f32.mrf.mxu0
    %v1816 = vadd.f32 %v1687, %v1815
    %1817 = vmatmul.bf16.gmra.mxu0 %v849
    %v1818 = vpop.f32.mrf.mxu0
    %v1819 = vadd.f32 %v1690, %v1818
    %v1820 = vpop.f32.mrf.mxu0
    %v1821 = vadd.f32 %v1692, %v1820
    %1822 = vmatmul.bf16.gmra.mxu0 %v852
    %v1823 = vpop.f32.mrf.mxu0
    %v1824 = vadd.f32 %v1695, %v1823
    %v1825 = vpop.f32.mrf.mxu0
    %v1826 = vadd.f32 %v1697, %v1825
    %1827 = vmatmul.bf16.gmra.mxu0 %v855
    %v1828 = vpop.f32.mrf.mxu0
    %v1829 = vadd.f32 %v1700, %v1828
    %v1830 = vpop.f32.mrf.mxu0
    %v1831 = vadd.f32 %v1702, %v1830
    %1832 = vmatmul.bf16.gmra.mxu0 %v858
    %v1833 = vpop.f32.mrf.mxu0
    %v1834 = vadd.f32 %v1705, %v1833
    %v1835 = vpop.f32.mrf.mxu0
    %v1836 = vadd.f32 %v1707, %v1835
    %1837 = vmatmul.bf16.gmra.mxu0 %v861
    %v1838 = vpop.f32.mrf.mxu0
    %v1839 = vadd.f32 %v1710, %v1838
    %v1840 = vpop.f32.mrf.mxu0
    %v1841 = vadd.f32 %v1712, %v1840
    %1842 = vmatmul.bf16.gmra.mxu0 %v864
    %v1843 = vpop.f32.mrf.mxu0
    %v1844 = vadd.f32 %v1715, %v1843
    %v1845 = vpop.f32.mrf.mxu0
    %v1846 = vadd.f32 %v1717, %v1845
    %1847 = vmatmul.bf16.gmra.mxu0 %v867
    %v1848 = vpop.f32.mrf.mxu0
    %v1849 = vadd.f32 %v1720, %v1848
    %v1850 = vpop.f32.mrf.mxu0
    %v1851 = vadd.f32 %v1722, %v1850
    %1852 = vmatmul.bf16.gmra.mxu0 %v870
    %v1853 = vpop.f32.mrf.mxu0
    %v1854 = vadd.f32 %v1725, %v1853
    %v1855 = vpop.f32.mrf.mxu0
    %v1856 = vadd.f32 %v1727, %v1855
    %1857 = vmatmul.bf16.gmra.mxu0 %v873
    %v1858 = vpop.f32.mrf.mxu0
    %v1859 = vadd.f32 %v1730, %v1858
    %v1860 = vpop.f32.mrf.mxu0
    %v1861 = vadd.f32 %v1732, %v1860
    %1862 = vmatmul.bf16.gmra.mxu0 %v876
    %v1863 = vpop.f32.mrf.mxu0
    %v1864 = vadd.f32 %v1735, %v1863
    %v1865 = vpop.f32.mrf.mxu0
    %v1866 = vadd.f32 %v1737, %v1865
    %1867 = vmatmul.bf16.gmra.mxu0 %v879
    %v1868 = vpop.f32.mrf.mxu0
    %v1869 = vadd.f32 %v1740, %v1868
    %v1870 = vpop.f32.mrf.mxu0
    %v1871 = vadd.f32 %v1742, %v1870
    %1872 = vmatmul.bf16.gmra.mxu0 %v882
    %v1873 = vpop.f32.mrf.mxu0
    %v1874 = vadd.f32 %v1745, %v1873
    %v1875 = vpop.f32.mrf.mxu0
    %v1876 = vadd.f32 %v1747, %v1875
    %1877 = vmatmul.bf16.gmra.mxu0 %v885
    %v1878 = vpop.f32.mrf.mxu0
    %v1879 = vadd.f32 %v1750, %v1878
    %v1880 = vpop.f32.mrf.mxu0
    %v1881 = vadd.f32 %v1752, %v1880
    %1882 = vmatmul.bf16.gmra.mxu0 %v888
    %v1883 = vpop.f32.mrf.mxu0
    %v1884 = vadd.f32 %v1755, %v1883
    %v1885 = vpop.f32.mrf.mxu0
    %v1886 = vadd.f32 %v1757, %v1885
    %1887 = vmatmul.bf16.gmra.mxu0 %v891
    %v1888 = vpop.f32.mrf.mxu0
    %v1889 = vadd.f32 %v1760, %v1888
    %v1890 = vpop.f32.mrf.mxu0
    %v1891 = vadd.f32 %v1762, %v1890
    %1892 = vmatmul.bf16.gmra.mxu0 %v894
    %v1893 = vpop.f32.mrf.mxu0
    %v1894 = vadd.f32 %v1765, %v1893
    %v1895 = vpop.f32.mrf.mxu0
    %v1896 = vadd.f32 %v1767, %v1895
    %1897 = vmatmul.bf16.gmra.mxu0 %v897
    %v1898 = vpop.f32.mrf.mxu0
    %v1899 = vadd.f32 %v1770, %v1898
    %v1900 = vpop.f32.mrf.mxu0
    %v1901 = vadd.f32 %v1772, %v1900
    %1902 = vmatmul.bf16.gmra.mxu0 %v900
    %v1903 = vpop.f32.mrf.mxu0
    %v1904 = vadd.f32 %v1775, %v1903
    %v1905 = vpop.f32.mrf.mxu0
    %v1906 = vadd.f32 %v1777, %v1905
    %1907 = vmatmul.bf16.gmra.mxu0 %v903
    %v1908 = vpop.f32.mrf.mxu0
    %v1909 = vadd.f32 %v1780, %v1908
    %v1910 = vpop.f32.mrf.mxu0
    %v1911 = vadd.f32 %v1782, %v1910
    %1912 = vmatmul.bf16.gmra.mxu0 %v906
    %v1913 = vpop.f32.mrf.mxu0
    %v1914 = vadd.f32 %v1785, %v1913
    %v1915 = vpop.f32.mrf.mxu0
    %v1916 = vadd.f32 %v1787, %v1915
    %1917 = vdwg.mxu0
    %1918 = vmatpush.bf16.msra.mxu0 %v1656
    %1919 = vmatpush.bf16.msra.mxu0 %v1655
    %1920 = vmatpush.bf16.msra.mxu0 %v1654
    %1921 = vmatpush.bf16.msra.mxu0 %v1653
    %1922 = vmatpush.bf16.msra.mxu0 %v1652
    %1923 = vmatpush.bf16.msra.mxu0 %v1651
    %1924 = vmatpush.bf16.msra.mxu0 %v1650
    %1925 = vmatpush.bf16.msra.mxu0 %v1649
    %1926 = vmatmul.bf16.gmra.mxu0 %v838
    %v1927 = vpop.f32.mrf.mxu0
    %v1928 = vadd.f32 %v1799, %v1927
    %v1929 = vpop.f32.mrf.mxu0
    %v1930 = vadd.f32 %v1801, %v1929
    %1931 = vmatmul.bf16.gmra.mxu0 %v841
    %v1932 = vpop.f32.mrf.mxu0
    %v1933 = vadd.f32 %v1804, %v1932
    %v1934 = vpop.f32.mrf.mxu0
    %v1935 = vadd.f32 %v1806, %v1934
    %1936 = vmatmul.bf16.gmra.mxu0 %v844
    %v1937 = vpop.f32.mrf.mxu0
    %v1938 = vadd.f32 %v1809, %v1937
    %v1939 = vpop.f32.mrf.mxu0
    %v1940 = vadd.f32 %v1811, %v1939
    %1941 = vmatmul.bf16.gmra.mxu0 %v847
    %v1942 = vpop.f32.mrf.mxu0
    %v1943 = vadd.f32 %v1814, %v1942
    %v1944 = vpop.f32.mrf.mxu0
    %v1945 = vadd.f32 %v1816, %v1944
    %1946 = vmatmul.bf16.gmra.mxu0 %v850
    %v1947 = vpop.f32.mrf.mxu0
    %v1948 = vadd.f32 %v1819, %v1947
    %v1949 = vpop.f32.mrf.mxu0
    %v1950 = vadd.f32 %v1821, %v1949
    %1951 = vmatmul.bf16.gmra.mxu0 %v853
    %v1952 = vpop.f32.mrf.mxu0
    %v1953 = vadd.f32 %v1824, %v1952
    %v1954 = vpop.f32.mrf.mxu0
    %v1955 = vadd.f32 %v1826, %v1954
    %1956 = vmatmul.bf16.gmra.mxu0 %v856
    %v1957 = vpop.f32.mrf.mxu0
    %v1958 = vadd.f32 %v1829, %v1957
    %v1959 = vpop.f32.mrf.mxu0
    %v1960 = vadd.f32 %v1831, %v1959
    %1961 = vmatmul.bf16.gmra.mxu0 %v859
    %v1962 = vpop.f32.mrf.mxu0
    %v1963 = vadd.f32 %v1834, %v1962
    %v1964 = vpop.f32.mrf.mxu0
    %v1965 = vadd.f32 %v1836, %v1964
    %1966 = vmatmul.bf16.gmra.mxu0 %v862
    %v1967 = vpop.f32.mrf.mxu0
    %v1968 = vadd.f32 %v1839, %v1967
    %v1969 = vpop.f32.mrf.mxu0
    %v1970 = vadd.f32 %v1841, %v1969
    %1971 = vmatmul.bf16.gmra.mxu0 %v865
    %v1972 = vpop.f32.mrf.mxu0
    %v1973 = vadd.f32 %v1844, %v1972
    %v1974 = vpop.f32.mrf.mxu0
    %v1975 = vadd.f32 %v1846, %v1974
    %1976 = vmatmul.bf16.gmra.mxu0 %v868
    %v1977 = vpop.f32.mrf.mxu0
    %v1978 = vadd.f32 %v1849, %v1977
    %v1979 = vpop.f32.mrf.mxu0
    %v1980 = vadd.f32 %v1851, %v1979
    %1981 = vmatmul.bf16.gmra.mxu0 %v871
    %v1982 = vpop.f32.mrf.mxu0
    %v1983 = vadd.f32 %v1854, %v1982
    %v1984 = vpop.f32.mrf.mxu0
    %v1985 = vadd.f32 %v1856, %v1984
    %1986 = vmatmul.bf16.gmra.mxu0 %v874
    %v1987 = vpop.f32.mrf.mxu0
    %v1988 = vadd.f32 %v1859, %v1987
    %v1989 = vpop.f32.mrf.mxu0
    %v1990 = vadd.f32 %v1861, %v1989
    %1991 = vmatmul.bf16.gmra.mxu0 %v877
    %v1992 = vpop.f32.mrf.mxu0
    %v1993 = vadd.f32 %v1864, %v1992
    %v1994 = vpop.f32.mrf.mxu0
    %v1995 = vadd.f32 %v1866, %v1994
    %1996 = vmatmul.bf16.gmra.mxu0 %v880
    %v1997 = vpop.f32.mrf.mxu0
    %v1998 = vadd.f32 %v1869, %v1997
    %v1999 = vpop.f32.mrf.mxu0
    %v2000 = vadd.f32 %v1871, %v1999
    %2001 = vmatmul.bf16.gmra.mxu0 %v883
    %v2002 = vpop.f32.mrf.mxu0
    %v2003 = vadd.f32 %v1874, %v2002
    %v2004 = vpop.f32.mrf.mxu0
    %v2005 = vadd.f32 %v1876, %v2004
    %2006 = vmatmul.bf16.gmra.mxu0 %v886
    %v2007 = vpop.f32.mrf.mxu0
    %v2008 = vadd.f32 %v1879, %v2007
    %v2009 = vpop.f32.mrf.mxu0
    %v2010 = vadd.f32 %v1881, %v2009
    %2011 = vmatmul.bf16.gmra.mxu0 %v889
    %v2012 = vpop.f32.mrf.mxu0
    %v2013 = vadd.f32 %v1884, %v2012
    %v2014 = vpop.f32.mrf.mxu0
    %v2015 = vadd.f32 %v1886, %v2014
    %2016 = vmatmul.bf16.gmra.mxu0 %v892
    %v2017 = vpop.f32.mrf.mxu0
    %v2018 = vadd.f32 %v1889, %v2017
    %v2019 = vpop.f32.mrf.mxu0
    %v2020 = vadd.f32 %v1891, %v2019
    %2021 = vmatmul.bf16.gmra.mxu0 %v895
    %v2022 = vpop.f32.mrf.mxu0
    %v2023 = vadd.f32 %v1894, %v2022
    %v2024 = vpop.f32.mrf.mxu0
    %v2025 = vadd.f32 %v1896, %v2024
    %2026 = vmatmul.bf16.gmra.mxu0 %v898
    %v2027 = vpop.f32.mrf.mxu0
    %v2028 = vadd.f32 %v1899, %v2027
    %v2029 = vpop.f32.mrf.mxu0
    %v2030 = vadd.f32 %v1901, %v2029
    %2031 = vmatmul.bf16.gmra.mxu0 %v901
    %v2032 = vpop.f32.mrf.mxu0
    %v2033 = vadd.f32 %v1904, %v2032
    %v2034 = vpop.f32.mrf.mxu0
    %v2035 = vadd.f32 %v1906, %v2034
    %2036 = vmatmul.bf16.gmra.mxu0 %v904
    %v2037 = vpop.f32.mrf.mxu0
    %v2038 = vadd.f32 %v1909, %v2037
    %v2039 = vpop.f32.mrf.mxu0
    %v2040 = vadd.f32 %v1911, %v2039
    %2041 = vmatmul.bf16.gmra.mxu0 %v907
    %v2042 = vpop.f32.mrf.mxu0
    %v2043 = vadd.f32 %v1914, %v2042
    %v2044 = vpop.f32.mrf.mxu0
    %v2045 = vadd.f32 %v1916, %v2044
    %2046 = vdwg.mxu0
    %2047 = vst [vmem:[#allocation10] sm:$0xff] %v1928
    %2048 = vst [vmem:[#allocation10 + $0x8] sm:$0xff] %v1930
    %2049 = vst [vmem:[#allocation10 + $0x10] sm:$0xff] %v1933
    %2050 = vst [vmem:[#allocation10 + $0x18] sm:$0xff] %v1935
    %2051 = vst [vmem:[#allocation10 + $0x20] sm:$0xff] %v1938
    %2052 = vst [vmem:[#allocation10 + $0x28] sm:$0xff] %v1940
    %2053 = vst [vmem:[#allocation10 + $0x30] sm:$0xff] %v1943
    %2054 = vst [vmem:[#allocation10 + $0x38] sm:$0xff] %v1945
    %2055 = vst [vmem:[#allocation10 + $0x40] sm:$0xff] %v1948
    %2056 = vst [vmem:[#allocation10 + $0x48] sm:$0xff] %v1950
    %2057 = vst [vmem:[#allocation10 + $0x50] sm:$0xff] %v1953
    %2058 = vst [vmem:[#allocation10 + $0x58] sm:$0xff] %v1955
    %2059 = vst [vmem:[#allocation10 + $0x60] sm:$0xff] %v1958
    %2060 = vst [vmem:[#allocation10 + $0x68] sm:$0xff] %v1960
    %2061 = vst [vmem:[#allocation10 + $0x70] sm:$0xff] %v1963
    %2062 = vst [vmem:[#allocation10 + $0x78] sm:$0xff] %v1965
    %2063 = vst [vmem:[#allocation10 + $0x80] sm:$0xff] %v1968
    %2064 = vst [vmem:[#allocation10 + $0x88] sm:$0xff] %v1970
    %2065 = vst [vmem:[#allocation10 + $0x90] sm:$0xff] %v1973
    %2066 = vst [vmem:[#allocation10 + $0x98] sm:$0xff] %v1975
    %2067 = vst [vmem:[#allocation10 + $0xa0] sm:$0xff] %v1978
    %2068 = vst [vmem:[#allocation10 + $0xa8] sm:$0xff] %v1980
    %2069 = vst [vmem:[#allocation10 + $0xb0] sm:$0xff] %v1983
    %2070 = vst [vmem:[#allocation10 + $0xb8] sm:$0xff] %v1985
    %2071 = vst [vmem:[#allocation10 + $0xc0] sm:$0xff] %v1988
    %2072 = vst [vmem:[#allocation10 + $0xc8] sm:$0xff] %v1990
    %2073 = vst [vmem:[#allocation10 + $0xd0] sm:$0xff] %v1993
    %2074 = vst [vmem:[#allocation10 + $0xd8] sm:$0xff] %v1995
    %2075 = vst [vmem:[#allocation10 + $0xe0] sm:$0xff] %v1998
    %2076 = vst [vmem:[#allocation10 + $0xe8] sm:$0xff] %v2000
    %2077 = vst [vmem:[#allocation10 + $0xf0] sm:$0xff] %v2003
    %2078 = vst [vmem:[#allocation10 + $0xf8] sm:$0xff] %v2005
    %2079 = vst [vmem:[#allocation10 + $0x100] sm:$0xff] %v2008
    %2080 = vst [vmem:[#allocation10 + $0x108] sm:$0xff] %v2010
    %2081 = vst [vmem:[#allocation10 + $0x110] sm:$0xff] %v2013
    %2082 = vst [vmem:[#allocation10 + $0x118] sm:$0xff] %v2015
    %2083 = vst [vmem:[#allocation10 + $0x120] sm:$0xff] %v2018
    %2084 = vst [vmem:[#allocation10 + $0x128] sm:$0xff] %v2020
    %2085 = vst [vmem:[#allocation10 + $0x130] sm:$0xff] %v2023
    %2086 = vst [vmem:[#allocation10 + $0x138] sm:$0xff] %v2025
    %2087 = vst [vmem:[#allocation10 + $0x140] sm:$0xff] %v2028
    %2088 = vst [vmem:[#allocation10 + $0x148] sm:$0xff] %v2030
    %2089 = vst [vmem:[#allocation10 + $0x150] sm:$0xff] %v2033
    %2090 = vst [vmem:[#allocation10 + $0x158] sm:$0xff] %v2035
    %2091 = vst [vmem:[#allocation10 + $0x160] sm:$0xff] %v2038
    %2092 = vst [vmem:[#allocation10 + $0x168] sm:$0xff] %v2040
    %2093 = vst [vmem:[#allocation10 + $0x170] sm:$0xff] %v2043
    %2094 = vst [vmem:[#allocation10 + $0x178] sm:$0xff] %v2045
    // Predicated region
    $region42: #{tpu_custom_call.1} parent=1 // pred_check
      _
    $region43: #{tpu_custom_call.1} parent=1 // pred_check_branch
      %2096 = sbr.rel (0) target = $region45
    $region44: #{tpu_custom_call.1} parent=1 // pred_region
      %2098 = vsyncadd [#allocation4], 0
      %s2099 = sshll.u32 [#allocation10], 4
      %s2100 = int_to_ptr.vmem [resolvable:$true] %s2099
      %s2101 = sshll.u32 %s6, 4
      %s2102 = int_to_ptr.hbm [resolvable:$true] %s2101
      %2107 = dma.vmem_to_hbm [thread:$0]  %s2100, 6144, %s2102, [#allocation4], 128, 128, 8
    $region45: #{tpu_custom_call.1} parent=1 // pred_fallthru
      _
    // Predicated region
    $region46: #{tpu_custom_call.1} parent=1 // pred_check
      _
    $region47: #{tpu_custom_call.1} parent=1 // pred_check_branch
      %2109 = sbr.rel (0) target = $region49
    $region48: #{tpu_custom_call.1} parent=1 // pred_region
      %2111 = dma.done [#allocation4], 6144
    $region49: #{tpu_custom_call.1} parent=1 // pred_fallthru
      _
    %2112 = vsyncpa [#allocation3], 1
    %2113 = vsyncpa [#allocation6], 1
    %2114 = vsyncpa [#allocation9], 1
    %2115 = vsyncpa [#allocation4], 1

</llo_original>
